<compile_context>
chip_gen: v7x
topology: tpu7x:2x2x1
jax: 0.10.0
libtpu: 0.0.40
codegen_flags: <defaults>
</compile_context>

<pallas_src>
import functools
import math

import jax
import jax.numpy as jnp
import numpy as np
from jax import lax
from jax.experimental import pallas as pl
from jax.experimental.pallas import tpu as pltpu


def mha_qkv_kernel(x_ref, w_qkv_ref, b_qkv_ref, wg_ref, bg_ref,
                   out_ref, attn_ref, *, batch, seq, num_heads, input_dim):
    B, S, D, H = batch, seq, input_dim, num_heads
    dh = D // H

    x = x_ref[...]                                    # (B*S, 3D) = [q | k | v]

    # Fused Q/K/V projection: one MXU pass over all B*S rows, one bias add.
    # The 1/sqrt(dh) softmax scale is already folded into the Q block/bias.
    qkv = jnp.dot(x, w_qkv_ref[...],
                  preferred_element_type=jnp.float32) + b_qkv_ref[...]   # (B*S, 3D)

    ctx_rows = []
    attn_rows = []
    # B and H are small compile-time constants -> static unrolled loops,
    # all slices below are static (zero-cost views / lane extracts).
    for b in range(B):
        rows = qkv[b * S:(b + 1) * S]                 # (S, 3D), sublane-aligned slice
        ctx_heads = []
        attn_heads = []
        for h in range(H):
            lo = h * dh
            hi = lo + dh
            Qh = rows[:, lo:hi]                       # (S, dh)  (pre-scaled)
            Kh = rows[:, D + lo:D + hi]               # (S, dh)
            Vh = rows[:, 2 * D + lo:2 * D + hi]       # (S, dh)

            # Q @ K^T without materializing a transpose: contract last dims.
            s = lax.dot_general(Qh, Kh, (((1,), (1,)), ((), ())),
                                preferred_element_type=jnp.float32)      # (S, S)
            s = s - jnp.max(s, axis=-1, keepdims=True)
            p = jnp.exp(s)
            # Exact reciprocal: attn is an external output and must row-sum
            # to 1 (denominator is only (S,1), so this is cheap).
            inv = 1.0 / jnp.sum(p, axis=-1, keepdims=True)
            a = p * inv                                                   # softmax
            attn_heads.append(a)
            ctx_heads.append(jnp.dot(a, Vh, preferred_element_type=jnp.float32))

        # In-vreg lane concatenation (D, H*S <= 128): no VMEM scratch round-trip.
        ctx_rows.append(jnp.concatenate(ctx_heads, axis=-1))             # (S, D)
        attn_rows.append(jnp.concatenate(attn_heads, axis=-1))           # (S, H*S)

    ctx = jnp.concatenate(ctx_rows, axis=0)                              # (B*S, D)
    attn = jnp.concatenate(attn_rows, axis=0)                            # (B*S, H*S)

    # Gate projection: one MXU pass over all B*S rows.
    gate = jax.nn.sigmoid(
        jnp.dot(ctx, wg_ref[...], preferred_element_type=jnp.float32) + bg_ref[...])

    # Two single stores (instead of many small per-batch/per-head stores).
    out_ref[...] = (gate * ctx).astype(out_ref.dtype)
    attn_ref[...] = attn.astype(attn_ref.dtype)


def multi_head_attention_qkv(q, k, v, params, num_heads):
    wq, bq, wk, bk, wv, bv, wg, bg = params
    B, S, D = q.shape
    dh = D // num_heads
    scale = 1.0 / math.sqrt(dh)

    # Fold the softmax scale into the Q projection (free: done once per call
    # on the XLA side), and fuse Q/K/V into one block-diagonal weight so the
    # kernel does a single MXU pass (exact: q, k, v are distinct inputs).
    w_qkv = jnp.zeros((3 * D, 3 * D), wq.dtype)
    w_qkv = (w_qkv.at[:D, :D].set(wq * scale)
                  .at[D:2 * D, D:2 * D].set(wk)
                  .at[2 * D:, 2 * D:].set(wv))
    b_qkv = jnp.concatenate([bq * scale, bk, bv], axis=-1)      # (1, 3D)

    # Whole batch in one grid step: flatten to (B*S, 3D).
    x = jnp.concatenate([q, k, v], axis=-1).reshape(B * S, 3 * D)

    kernel = functools.partial(mha_qkv_kernel, batch=B, seq=S,
                               num_heads=num_heads, input_dim=D)

    in_specs = [
        pl.BlockSpec((B * S, 3 * D), lambda i: (0, 0)),   # [q|k|v], all batches
        pl.BlockSpec((3 * D, 3 * D), lambda i: (0, 0)),   # fused (pre-scaled) QKV weight
        pl.BlockSpec((1, 3 * D), lambda i: (0, 0)),       # fused QKV bias
        pl.BlockSpec((D, D), lambda i: (0, 0)),           # gate weight
        pl.BlockSpec((1, D), lambda i: (0, 0)),           # gate bias
    ]
    out_shapes = (
        jax.ShapeDtypeStruct((B * S, D), jnp.float32),               # out (flattened)
        jax.ShapeDtypeStruct((B * S, num_heads * S), jnp.float32),   # attn (flattened)
    )
    out_specs = (
        pl.BlockSpec((B * S, D), lambda i: (0, 0)),
        pl.BlockSpec((B * S, num_heads * S), lambda i: (0, 0)),
    )

    out_flat, attn_flat = pl.pallas_call(
        kernel,
        out_shape=out_shapes,
        grid=(1,),
        in_specs=in_specs,
        out_specs=out_specs,
        compiler_params=pltpu.CompilerParams(
            dimension_semantics=("arbitrary",)),
    )(x, w_qkv, b_qkv, wg, bg)

    # Wrapper-side layout plumbing back to the module's output shapes.
    out = out_flat.reshape(B, S, D)
    attn = attn_flat.reshape(B, S, num_heads, S).transpose(0, 2, 1, 3)
    return out, attn


def reference(q, k, v, params, num_heads):
    """Pure-JAX reference matching the PyTorch forward semantics."""
    wq, bq, wk, bk, wv, bv, wg, bg = params
    B, S, D = q.shape
    dh = D // num_heads

    def split(x):  # (B, S, D) -> (B, H, S, dh)
        return x.reshape(B, S, num_heads, dh).transpose(0, 2, 1, 3)

    Q = split(q @ wq + bq)
    K = split(k @ wk + bk)
    V = split(v @ wv + bv)
    scores = jnp.einsum("bhsd,bhtd->bhst", Q, K) / jnp.sqrt(jnp.float32(dh))
    attn = jax.nn.softmax(scores, axis=-1)
    out = jnp.einsum("bhst,bhtd->bhsd", attn, V)
    out = out.transpose(0, 2, 1, 3).reshape(B, S, D)
    gate = jax.nn.sigmoid(out @ wg + bg)
    return gate * out, attn


if __name__ == "__main__":
    B, S, D, H = 2, 8, 32, 4  # batch, seq, input_dim, num_heads

    key = jax.random.PRNGKey(0)
    keys = jax.random.split(key, 11)

    q = jax.random.normal(keys[0], (B, S, D), jnp.float32)
    k = jax.random.normal(keys[1], (B, S, D), jnp.float32)
    v = jax.random.normal(keys[2], (B, S, D), jnp.float32)

    # Deterministic parameter init (nn.Linear-like uniform), weights stored (in, out).
    bound = 1.0 / math.sqrt(D)

    def init_linear(kw, kb):
        w = jax.random.uniform(kw, (D, D), jnp.float32, -bound, bound)
        b = jax.random.uniform(kb, (1, D), jnp.float32, -bound, bound)
        return w, b

    wq, bq = init_linear(keys[3], keys[4])
    wk, bk = init_linear(keys[5], keys[6])
    wv, bv = init_linear(keys[7], keys[8])
    wg, bg = init_linear(keys[9], keys[10])
    params = (wq, bq, wk, bk, wv, bv, wg, bg)

    out, attn = multi_head_attention_qkv(q, k, v, params, H)
    jax.block_until_ready((out, attn))

    out_ref, attn_ref = reference(q, k, v, params, H)
    # Exact softmax normalization is back in the kernel, so tolerances are
    # tight again (only fp reassociation from the folded scale / fused matmul).
    np.testing.assert_allclose(np.asarray(out), np.asarray(out_ref), rtol=1e-4, atol=1e-5)
    np.testing.assert_allclose(np.asarray(attn), np.asarray(attn_ref), rtol=1e-4, atol=1e-5)

    print("KERNEL_OK")
</pallas_src>

<mosaic_0001>
module attributes {stable_mosaic.version = 11 : i64} {
  func.func @mha_qkv_kernel(%arg0: i32, %arg1: memref<16x96xf32, #tpu.memory_space<vmem>>, %arg2: memref<96x96xf32, #tpu.memory_space<vmem>>, %arg3: memref<1x96xf32, #tpu.memory_space<vmem>>, %arg4: memref<32x32xf32, #tpu.memory_space<vmem>>, %arg5: memref<1x32xf32, #tpu.memory_space<vmem>>, %arg6: memref<16x32xf32, #tpu.memory_space<vmem>>, %arg7: memref<16x32xf32, #tpu.memory_space<vmem>>) attributes {dimension_semantics = [#tpu.dimension_semantics<arbitrary>], iteration_bounds = array<i64: 1>, scalar_prefetch = 0 : i64, scratch_operands = 0 : i64, tpu.core_type = #tpu.core_type<tc>, window_params = [{pipeline_mode = #tpu.pipeline_mode<synchronous>, transform_indices = @transform_0, window_bounds = array<i64: 16, 96>}, {pipeline_mode = #tpu.pipeline_mode<synchronous>, transform_indices = @transform_1, window_bounds = array<i64: 96, 96>}, {pipeline_mode = #tpu.pipeline_mode<synchronous>, transform_indices = @transform_2, window_bounds = array<i64: 1, 96>}, {pipeline_mode = #tpu.pipeline_mode<synchronous>, transform_indices = @transform_3, window_bounds = array<i64: 32, 32>}, {pipeline_mode = #tpu.pipeline_mode<synchronous>, transform_indices = @transform_4, window_bounds = array<i64: 1, 32>}, {pipeline_mode = #tpu.pipeline_mode<synchronous>, transform_indices = @transform_5, window_bounds = array<i64: 16, 32>}, {pipeline_mode = #tpu.pipeline_mode<synchronous>, transform_indices = @transform_6, window_bounds = array<i64: 16, 32>}]} {
    %c0 = arith.constant 0 : index
    %c0_0 = arith.constant 0 : index
    %0 = vector.load %arg1[%c0, %c0_0] : memref<16x96xf32, #tpu.memory_space<vmem>>, vector<16x96xf32>
    %c0_1 = arith.constant 0 : index
    %c0_2 = arith.constant 0 : index
    %1 = vector.load %arg2[%c0_1, %c0_2] : memref<96x96xf32, #tpu.memory_space<vmem>>, vector<96x96xf32>
    %cst = arith.constant dense<0.000000e+00> : vector<16x96xf32>
    %2 = tpu.matmul %0, %1, %cst {dimension_numbers = #tpu.dot_dimension_numbers<[1], [0], [0], [1], [0, 0, 1, 1], [], []>} : vector<16x96xf32>, vector<96x96xf32>, vector<16x96xf32> -> vector<16x96xf32>
    %c0_3 = arith.constant 0 : index
    %c0_4 = arith.constant 0 : index
    %3 = vector.load %arg3[%c0_3, %c0_4] : memref<1x96xf32, #tpu.memory_space<vmem>>, vector<1x96xf32>
    %4 = vector.broadcast %3 : vector<1x96xf32> to vector<16x96xf32>
    %5 = arith.addf %2, %4 : vector<16x96xf32>
    %6 = vector.extract_strided_slice %5 {offsets = [0, 0], sizes = [8, 96], strides = [1, 1]} : vector<16x96xf32> to vector<8x96xf32>
    %7 = vector.extract_strided_slice %6 {offsets = [0, 0], sizes = [8, 8], strides = [1, 1]} : vector<8x96xf32> to vector<8x8xf32>
    %8 = vector.extract_strided_slice %6 {offsets = [0, 32], sizes = [8, 8], strides = [1, 1]} : vector<8x96xf32> to vector<8x8xf32>
    %9 = vector.extract_strided_slice %6 {offsets = [0, 64], sizes = [8, 8], strides = [1, 1]} : vector<8x96xf32> to vector<8x8xf32>
    %cst_5 = arith.constant dense<0.000000e+00> : vector<8x8xf32>
    %10 = tpu.matmul %7, %8, %cst_5 {dimension_numbers = #tpu.dot_dimension_numbers<[1], [1], [0], [0], [0, 0, 1, 0], [], []>} : vector<8x8xf32>, vector<8x8xf32>, vector<8x8xf32> -> vector<8x8xf32>
    %cst_6 = arith.constant dense<0xFF800000> : vector<8xf32>
    %11 = vector.multi_reduction <maximumf>, %10, %cst_6 [1] : vector<8x8xf32> to vector<8xf32>
    %12 = vector.shape_cast %11 : vector<8xf32> to vector<8x1xf32>
    %13 = vector.broadcast %12 : vector<8x1xf32> to vector<8x8xf32>
    %14 = arith.subf %10, %13 : vector<8x8xf32>
    %15 = math.exp %14 : vector<8x8xf32>
    %cst_7 = arith.constant dense<0.000000e+00> : vector<8xf32>
    %16 = vector.multi_reduction <add>, %15, %cst_7 [1] : vector<8x8xf32> to vector<8xf32>
    %17 = vector.shape_cast %16 : vector<8xf32> to vector<8x1xf32>
    %cst_8 = arith.constant 1.000000e+00 : f32
    %18 = vector.broadcast %cst_8 : f32 to vector<8x1xf32>
    %19 = arith.divf %18, %17 : vector<8x1xf32>
    %20 = vector.broadcast %19 : vector<8x1xf32> to vector<8x8xf32>
    %21 = arith.mulf %15, %20 : vector<8x8xf32>
    %cst_9 = arith.constant dense<0.000000e+00> : vector<8x8xf32>
    %22 = tpu.matmul %21, %9, %cst_9 {dimension_numbers = #tpu.dot_dimension_numbers<[1], [0], [0], [1], [0, 0, 1, 1], [], []>} : vector<8x8xf32>, vector<8x8xf32>, vector<8x8xf32> -> vector<8x8xf32>
    %23 = vector.extract_strided_slice %6 {offsets = [0, 8], sizes = [8, 8], strides = [1, 1]} : vector<8x96xf32> to vector<8x8xf32>
    %24 = vector.extract_strided_slice %6 {offsets = [0, 40], sizes = [8, 8], strides = [1, 1]} : vector<8x96xf32> to vector<8x8xf32>
    %25 = vector.extract_strided_slice %6 {offsets = [0, 72], sizes = [8, 8], strides = [1, 1]} : vector<8x96xf32> to vector<8x8xf32>
    %cst_10 = arith.constant dense<0.000000e+00> : vector<8x8xf32>
    %26 = tpu.matmul %23, %24, %cst_10 {dimension_numbers = #tpu.dot_dimension_numbers<[1], [1], [0], [0], [0, 0, 1, 0], [], []>} : vector<8x8xf32>, vector<8x8xf32>, vector<8x8xf32> -> vector<8x8xf32>
    %cst_11 = arith.constant dense<0xFF800000> : vector<8xf32>
    %27 = vector.multi_reduction <maximumf>, %26, %cst_11 [1] : vector<8x8xf32> to vector<8xf32>
    %28 = vector.shape_cast %27 : vector<8xf32> to vector<8x1xf32>
    %29 = vector.broadcast %28 : vector<8x1xf32> to vector<8x8xf32>
    %30 = arith.subf %26, %29 : vector<8x8xf32>
    %31 = math.exp %30 : vector<8x8xf32>
    %cst_12 = arith.constant dense<0.000000e+00> : vector<8xf32>
    %32 = vector.multi_reduction <add>, %31, %cst_12 [1] : vector<8x8xf32> to vector<8xf32>
    %33 = vector.shape_cast %32 : vector<8xf32> to vector<8x1xf32>
    %cst_13 = arith.constant 1.000000e+00 : f32
    %34 = vector.broadcast %cst_13 : f32 to vector<8x1xf32>
    %35 = arith.divf %34, %33 : vector<8x1xf32>
    %36 = vector.broadcast %35 : vector<8x1xf32> to vector<8x8xf32>
    %37 = arith.mulf %31, %36 : vector<8x8xf32>
    %cst_14 = arith.constant dense<0.000000e+00> : vector<8x8xf32>
    %38 = tpu.matmul %37, %25, %cst_14 {dimension_numbers = #tpu.dot_dimension_numbers<[1], [0], [0], [1], [0, 0, 1, 1], [], []>} : vector<8x8xf32>, vector<8x8xf32>, vector<8x8xf32> -> vector<8x8xf32>
    %39 = vector.extract_strided_slice %6 {offsets = [0, 16], sizes = [8, 8], strides = [1, 1]} : vector<8x96xf32> to vector<8x8xf32>
    %40 = vector.extract_strided_slice %6 {offsets = [0, 48], sizes = [8, 8], strides = [1, 1]} : vector<8x96xf32> to vector<8x8xf32>
    %41 = vector.extract_strided_slice %6 {offsets = [0, 80], sizes = [8, 8], strides = [1, 1]} : vector<8x96xf32> to vector<8x8xf32>
    %cst_15 = arith.constant dense<0.000000e+00> : vector<8x8xf32>
    %42 = tpu.matmul %39, %40, %cst_15 {dimension_numbers = #tpu.dot_dimension_numbers<[1], [1], [0], [0], [0, 0, 1, 0], [], []>} : vector<8x8xf32>, vector<8x8xf32>, vector<8x8xf32> -> vector<8x8xf32>
    %cst_16 = arith.constant dense<0xFF800000> : vector<8xf32>
    %43 = vector.multi_reduction <maximumf>, %42, %cst_16 [1] : vector<8x8xf32> to vector<8xf32>
    %44 = vector.shape_cast %43 : vector<8xf32> to vector<8x1xf32>
    %45 = vector.broadcast %44 : vector<8x1xf32> to vector<8x8xf32>
    %46 = arith.subf %42, %45 : vector<8x8xf32>
    %47 = math.exp %46 : vector<8x8xf32>
    %cst_17 = arith.constant dense<0.000000e+00> : vector<8xf32>
    %48 = vector.multi_reduction <add>, %47, %cst_17 [1] : vector<8x8xf32> to vector<8xf32>
    %49 = vector.shape_cast %48 : vector<8xf32> to vector<8x1xf32>
    %cst_18 = arith.constant 1.000000e+00 : f32
    %50 = vector.broadcast %cst_18 : f32 to vector<8x1xf32>
    %51 = arith.divf %50, %49 : vector<8x1xf32>
    %52 = vector.broadcast %51 : vector<8x1xf32> to vector<8x8xf32>
    %53 = arith.mulf %47, %52 : vector<8x8xf32>
    %cst_19 = arith.constant dense<0.000000e+00> : vector<8x8xf32>
    %54 = tpu.matmul %53, %41, %cst_19 {dimension_numbers = #tpu.dot_dimension_numbers<[1], [0], [0], [1], [0, 0, 1, 1], [], []>} : vector<8x8xf32>, vector<8x8xf32>, vector<8x8xf32> -> vector<8x8xf32>
    %55 = vector.extract_strided_slice %6 {offsets = [0, 24], sizes = [8, 8], strides = [1, 1]} : vector<8x96xf32> to vector<8x8xf32>
    %56 = vector.extract_strided_slice %6 {offsets = [0, 56], sizes = [8, 8], strides = [1, 1]} : vector<8x96xf32> to vector<8x8xf32>
    %57 = vector.extract_strided_slice %6 {offsets = [0, 88], sizes = [8, 8], strides = [1, 1]} : vector<8x96xf32> to vector<8x8xf32>
    %cst_20 = arith.constant dense<0.000000e+00> : vector<8x8xf32>
    %58 = tpu.matmul %55, %56, %cst_20 {dimension_numbers = #tpu.dot_dimension_numbers<[1], [1], [0], [0], [0, 0, 1, 0], [], []>} : vector<8x8xf32>, vector<8x8xf32>, vector<8x8xf32> -> vector<8x8xf32>
    %cst_21 = arith.constant dense<0xFF800000> : vector<8xf32>
    %59 = vector.multi_reduction <maximumf>, %58, %cst_21 [1] : vector<8x8xf32> to vector<8xf32>
    %60 = vector.shape_cast %59 : vector<8xf32> to vector<8x1xf32>
    %61 = vector.broadcast %60 : vector<8x1xf32> to vector<8x8xf32>
    %62 = arith.subf %58, %61 : vector<8x8xf32>
    %63 = math.exp %62 : vector<8x8xf32>
    %cst_22 = arith.constant dense<0.000000e+00> : vector<8xf32>
    %64 = vector.multi_reduction <add>, %63, %cst_22 [1] : vector<8x8xf32> to vector<8xf32>
    %65 = vector.shape_cast %64 : vector<8xf32> to vector<8x1xf32>
    %cst_23 = arith.constant 1.000000e+00 : f32
    %66 = vector.broadcast %cst_23 : f32 to vector<8x1xf32>
    %67 = arith.divf %66, %65 : vector<8x1xf32>
    %68 = vector.broadcast %67 : vector<8x1xf32> to vector<8x8xf32>
    %69 = arith.mulf %63, %68 : vector<8x8xf32>
    %cst_24 = arith.constant dense<0.000000e+00> : vector<8x8xf32>
    %70 = tpu.matmul %69, %57, %cst_24 {dimension_numbers = #tpu.dot_dimension_numbers<[1], [0], [0], [1], [0, 0, 1, 1], [], []>} : vector<8x8xf32>, vector<8x8xf32>, vector<8x8xf32> -> vector<8x8xf32>
    %71 = tpu.concatenate %22, %38, %54, %70 in 1 : vector<8x8xf32>, vector<8x8xf32>, vector<8x8xf32>, vector<8x8xf32> -> vector<8x32xf32>
    %72 = tpu.concatenate %21, %37, %53, %69 in 1 : vector<8x8xf32>, vector<8x8xf32>, vector<8x8xf32>, vector<8x8xf32> -> vector<8x32xf32>
    %73 = vector.extract_strided_slice %5 {offsets = [8, 0], sizes = [8, 96], strides = [1, 1]} : vector<16x96xf32> to vector<8x96xf32>
    %74 = vector.extract_strided_slice %73 {offsets = [0, 0], sizes = [8, 8], strides = [1, 1]} : vector<8x96xf32> to vector<8x8xf32>
    %75 = vector.extract_strided_slice %73 {offsets = [0, 32], sizes = [8, 8], strides = [1, 1]} : vector<8x96xf32> to vector<8x8xf32>
    %76 = vector.extract_strided_slice %73 {offsets = [0, 64], sizes = [8, 8], strides = [1, 1]} : vector<8x96xf32> to vector<8x8xf32>
    %cst_25 = arith.constant dense<0.000000e+00> : vector<8x8xf32>
    %77 = tpu.matmul %74, %75, %cst_25 {dimension_numbers = #tpu.dot_dimension_numbers<[1], [1], [0], [0], [0, 0, 1, 0], [], []>} : vector<8x8xf32>, vector<8x8xf32>, vector<8x8xf32> -> vector<8x8xf32>
    %cst_26 = arith.constant dense<0xFF800000> : vector<8xf32>
    %78 = vector.multi_reduction <maximumf>, %77, %cst_26 [1] : vector<8x8xf32> to vector<8xf32>
    %79 = vector.shape_cast %78 : vector<8xf32> to vector<8x1xf32>
    %80 = vector.broadcast %79 : vector<8x1xf32> to vector<8x8xf32>
    %81 = arith.subf %77, %80 : vector<8x8xf32>
    %82 = math.exp %81 : vector<8x8xf32>
    %cst_27 = arith.constant dense<0.000000e+00> : vector<8xf32>
    %83 = vector.multi_reduction <add>, %82, %cst_27 [1] : vector<8x8xf32> to vector<8xf32>
    %84 = vector.shape_cast %83 : vector<8xf32> to vector<8x1xf32>
    %cst_28 = arith.constant 1.000000e+00 : f32
    %85 = vector.broadcast %cst_28 : f32 to vector<8x1xf32>
    %86 = arith.divf %85, %84 : vector<8x1xf32>
    %87 = vector.broadcast %86 : vector<8x1xf32> to vector<8x8xf32>
    %88 = arith.mulf %82, %87 : vector<8x8xf32>
    %cst_29 = arith.constant dense<0.000000e+00> : vector<8x8xf32>
    %89 = tpu.matmul %88, %76, %cst_29 {dimension_numbers = #tpu.dot_dimension_numbers<[1], [0], [0], [1], [0, 0, 1, 1], [], []>} : vector<8x8xf32>, vector<8x8xf32>, vector<8x8xf32> -> vector<8x8xf32>
    %90 = vector.extract_strided_slice %73 {offsets = [0, 8], sizes = [8, 8], strides = [1, 1]} : vector<8x96xf32> to vector<8x8xf32>
    %91 = vector.extract_strided_slice %73 {offsets = [0, 40], sizes = [8, 8], strides = [1, 1]} : vector<8x96xf32> to vector<8x8xf32>
    %92 = vector.extract_strided_slice %73 {offsets = [0, 72], sizes = [8, 8], strides = [1, 1]} : vector<8x96xf32> to vector<8x8xf32>
    %cst_30 = arith.constant dense<0.000000e+00> : vector<8x8xf32>
    %93 = tpu.matmul %90, %91, %cst_30 {dimension_numbers = #tpu.dot_dimension_numbers<[1], [1], [0], [0], [0, 0, 1, 0], [], []>} : vector<8x8xf32>, vector<8x8xf32>, vector<8x8xf32> -> vector<8x8xf32>
    %cst_31 = arith.constant dense<0xFF800000> : vector<8xf32>
    %94 = vector.multi_reduction <maximumf>, %93, %cst_31 [1] : vector<8x8xf32> to vector<8xf32>
    %95 = vector.shape_cast %94 : vector<8xf32> to vector<8x1xf32>
    %96 = vector.broadcast %95 : vector<8x1xf32> to vector<8x8xf32>
    %97 = arith.subf %93, %96 : vector<8x8xf32>
    %98 = math.exp %97 : vector<8x8xf32>
    %cst_32 = arith.constant dense<0.000000e+00> : vector<8xf32>
    %99 = vector.multi_reduction <add>, %98, %cst_32 [1] : vector<8x8xf32> to vector<8xf32>
    %100 = vector.shape_cast %99 : vector<8xf32> to vector<8x1xf32>
    %cst_33 = arith.constant 1.000000e+00 : f32
    %101 = vector.broadcast %cst_33 : f32 to vector<8x1xf32>
    %102 = arith.divf %101, %100 : vector<8x1xf32>
    %103 = vector.broadcast %102 : vector<8x1xf32> to vector<8x8xf32>
    %104 = arith.mulf %98, %103 : vector<8x8xf32>
    %cst_34 = arith.constant dense<0.000000e+00> : vector<8x8xf32>
    %105 = tpu.matmul %104, %92, %cst_34 {dimension_numbers = #tpu.dot_dimension_numbers<[1], [0], [0], [1], [0, 0, 1, 1], [], []>} : vector<8x8xf32>, vector<8x8xf32>, vector<8x8xf32> -> vector<8x8xf32>
    %106 = vector.extract_strided_slice %73 {offsets = [0, 16], sizes = [8, 8], strides = [1, 1]} : vector<8x96xf32> to vector<8x8xf32>
    %107 = vector.extract_strided_slice %73 {offsets = [0, 48], sizes = [8, 8], strides = [1, 1]} : vector<8x96xf32> to vector<8x8xf32>
    %108 = vector.extract_strided_slice %73 {offsets = [0, 80], sizes = [8, 8], strides = [1, 1]} : vector<8x96xf32> to vector<8x8xf32>
    %cst_35 = arith.constant dense<0.000000e+00> : vector<8x8xf32>
    %109 = tpu.matmul %106, %107, %cst_35 {dimension_numbers = #tpu.dot_dimension_numbers<[1], [1], [0], [0], [0, 0, 1, 0], [], []>} : vector<8x8xf32>, vector<8x8xf32>, vector<8x8xf32> -> vector<8x8xf32>
    %cst_36 = arith.constant dense<0xFF800000> : vector<8xf32>
    %110 = vector.multi_reduction <maximumf>, %109, %cst_36 [1] : vector<8x8xf32> to vector<8xf32>
    %111 = vector.shape_cast %110 : vector<8xf32> to vector<8x1xf32>
    %112 = vector.broadcast %111 : vector<8x1xf32> to vector<8x8xf32>
    %113 = arith.subf %109, %112 : vector<8x8xf32>
    %114 = math.exp %113 : vector<8x8xf32>
    %cst_37 = arith.constant dense<0.000000e+00> : vector<8xf32>
    %115 = vector.multi_reduction <add>, %114, %cst_37 [1] : vector<8x8xf32> to vector<8xf32>
    %116 = vector.shape_cast %115 : vector<8xf32> to vector<8x1xf32>
    %cst_38 = arith.constant 1.000000e+00 : f32
    %117 = vector.broadcast %cst_38 : f32 to vector<8x1xf32>
    %118 = arith.divf %117, %116 : vector<8x1xf32>
    %119 = vector.broadcast %118 : vector<8x1xf32> to vector<8x8xf32>
    %120 = arith.mulf %114, %119 : vector<8x8xf32>
    %cst_39 = arith.constant dense<0.000000e+00> : vector<8x8xf32>
    %121 = tpu.matmul %120, %108, %cst_39 {dimension_numbers = #tpu.dot_dimension_numbers<[1], [0], [0], [1], [0, 0, 1, 1], [], []>} : vector<8x8xf32>, vector<8x8xf32>, vector<8x8xf32> -> vector<8x8xf32>
    %122 = vector.extract_strided_slice %73 {offsets = [0, 24], sizes = [8, 8], strides = [1, 1]} : vector<8x96xf32> to vector<8x8xf32>
    %123 = vector.extract_strided_slice %73 {offsets = [0, 56], sizes = [8, 8], strides = [1, 1]} : vector<8x96xf32> to vector<8x8xf32>
    %124 = vector.extract_strided_slice %73 {offsets = [0, 88], sizes = [8, 8], strides = [1, 1]} : vector<8x96xf32> to vector<8x8xf32>
    %cst_40 = arith.constant dense<0.000000e+00> : vector<8x8xf32>
    %125 = tpu.matmul %122, %123, %cst_40 {dimension_numbers = #tpu.dot_dimension_numbers<[1], [1], [0], [0], [0, 0, 1, 0], [], []>} : vector<8x8xf32>, vector<8x8xf32>, vector<8x8xf32> -> vector<8x8xf32>
    %cst_41 = arith.constant dense<0xFF800000> : vector<8xf32>
    %126 = vector.multi_reduction <maximumf>, %125, %cst_41 [1] : vector<8x8xf32> to vector<8xf32>
    %127 = vector.shape_cast %126 : vector<8xf32> to vector<8x1xf32>
    %128 = vector.broadcast %127 : vector<8x1xf32> to vector<8x8xf32>
    %129 = arith.subf %125, %128 : vector<8x8xf32>
    %130 = math.exp %129 : vector<8x8xf32>
    %cst_42 = arith.constant dense<0.000000e+00> : vector<8xf32>
    %131 = vector.multi_reduction <add>, %130, %cst_42 [1] : vector<8x8xf32> to vector<8xf32>
    %132 = vector.shape_cast %131 : vector<8xf32> to vector<8x1xf32>
    %cst_43 = arith.constant 1.000000e+00 : f32
    %133 = vector.broadcast %cst_43 : f32 to vector<8x1xf32>
    %134 = arith.divf %133, %132 : vector<8x1xf32>
    %135 = vector.broadcast %134 : vector<8x1xf32> to vector<8x8xf32>
    %136 = arith.mulf %130, %135 : vector<8x8xf32>
    %cst_44 = arith.constant dense<0.000000e+00> : vector<8x8xf32>
    %137 = tpu.matmul %136, %124, %cst_44 {dimension_numbers = #tpu.dot_dimension_numbers<[1], [0], [0], [1], [0, 0, 1, 1], [], []>} : vector<8x8xf32>, vector<8x8xf32>, vector<8x8xf32> -> vector<8x8xf32>
    %138 = tpu.concatenate %89, %105, %121, %137 in 1 : vector<8x8xf32>, vector<8x8xf32>, vector<8x8xf32>, vector<8x8xf32> -> vector<8x32xf32>
    %139 = tpu.concatenate %88, %104, %120, %136 in 1 : vector<8x8xf32>, vector<8x8xf32>, vector<8x8xf32>, vector<8x8xf32> -> vector<8x32xf32>
    %140 = tpu.concatenate %71, %138 in 0 : vector<8x32xf32>, vector<8x32xf32> -> vector<16x32xf32>
    %141 = tpu.concatenate %72, %139 in 0 : vector<8x32xf32>, vector<8x32xf32> -> vector<16x32xf32>
    %c0_45 = arith.constant 0 : index
    %c0_46 = arith.constant 0 : index
    %142 = vector.load %arg4[%c0_45, %c0_46] : memref<32x32xf32, #tpu.memory_space<vmem>>, vector<32x32xf32>
    %cst_47 = arith.constant dense<0.000000e+00> : vector<16x32xf32>
    %143 = tpu.matmul %140, %142, %cst_47 {dimension_numbers = #tpu.dot_dimension_numbers<[1], [0], [0], [1], [0, 0, 1, 1], [], []>} : vector<16x32xf32>, vector<32x32xf32>, vector<16x32xf32> -> vector<16x32xf32>
    %c0_48 = arith.constant 0 : index
    %c0_49 = arith.constant 0 : index
    %144 = vector.load %arg5[%c0_48, %c0_49] : memref<1x32xf32, #tpu.memory_space<vmem>>, vector<1x32xf32>
    %145 = vector.broadcast %144 : vector<1x32xf32> to vector<16x32xf32>
    %146 = arith.addf %143, %145 : vector<16x32xf32>
    %147 = arith.negf %146 : vector<16x32xf32>
    %148 = math.exp %147 : vector<16x32xf32>
    %cst_50 = arith.constant 1.000000e+00 : f32
    %149 = vector.broadcast %cst_50 : f32 to vector<16x32xf32>
    %150 = arith.addf %149, %148 : vector<16x32xf32>
    %151 = arith.divf %149, %150 : vector<16x32xf32>
    %152 = arith.mulf %151, %140 : vector<16x32xf32>
    %c0_51 = arith.constant 0 : index
    %c0_52 = arith.constant 0 : index
    %153 = vector.load %arg6[%c0_51, %c0_52] : memref<16x32xf32, #tpu.memory_space<vmem>>, vector<16x32xf32>
    tpu.vector_store %arg6[%c0_51, %c0_52], %152 {strides = array<i32>} : memref<16x32xf32, #tpu.memory_space<vmem>>, vector<16x32xf32>,
    %c0_53 = arith.constant 0 : index
    %c0_54 = arith.constant 0 : index
    %154 = vector.load %arg7[%c0_53, %c0_54] : memref<16x32xf32, #tpu.memory_space<vmem>>, vector<16x32xf32>
    tpu.vector_store %arg7[%c0_53, %c0_54], %141 {strides = array<i32>} : memref<16x32xf32, #tpu.memory_space<vmem>>, vector<16x32xf32>,
    return
  }
  func.func @transform_0(%arg0: i32) -> (i32, i32) {
    %c0_i32 = arith.constant 0 : i32
    %c0_i32_0 = arith.constant 0 : i32
    %c0_i32_1 = arith.constant 0 : i32
    return %c0_i32, %c0_i32_0 : i32, i32
  }
  func.func @transform_1(%arg0: i32) -> (i32, i32) {
    %c0_i32 = arith.constant 0 : i32
    %c0_i32_0 = arith.constant 0 : i32
    %c0_i32_1 = arith.constant 0 : i32
    return %c0_i32, %c0_i32_0 : i32, i32
  }
  func.func @transform_2(%arg0: i32) -> (i32, i32) {
    %c0_i32 = arith.constant 0 : i32
    %c0_i32_0 = arith.constant 0 : i32
    %c0_i32_1 = arith.constant 0 : i32
    return %c0_i32, %c0_i32_0 : i32, i32
  }
  func.func @transform_3(%arg0: i32) -> (i32, i32) {
    %c0_i32 = arith.constant 0 : i32
    %c0_i32_0 = arith.constant 0 : i32
    %c0_i32_1 = arith.constant 0 : i32
    return %c0_i32, %c0_i32_0 : i32, i32
  }
  func.func @transform_4(%arg0: i32) -> (i32, i32) {
    %c0_i32 = arith.constant 0 : i32
    %c0_i32_0 = arith.constant 0 : i32
    %c0_i32_1 = arith.constant 0 : i32
    return %c0_i32, %c0_i32_0 : i32, i32
  }
  func.func @transform_5(%arg0: i32) -> (i32, i32) {
    %c0_i32 = arith.constant 0 : i32
    %c0_i32_0 = arith.constant 0 : i32
    %c0_i32_1 = arith.constant 0 : i32
    return %c0_i32, %c0_i32_0 : i32, i32
  }
  func.func @transform_6(%arg0: i32) -> (i32, i32) {
    %c0_i32 = arith.constant 0 : i32
    %c0_i32_0 = arith.constant 0 : i32
    %c0_i32_1 = arith.constant 0 : i32
    return %c0_i32, %c0_i32_0 : i32, i32
  }
}

</mosaic_0001>

<llo_original>
// kernel: tpu_custom_call.1
$region0: #{tpu_custom_call.1}
  #allocation0 [shape = 'u32[]', space=smem, size = 0x4, offset = 0x4, fixed_abs, tag = 'smem constant byte address 0x4 - core index']
  #allocation1 [shape = 'u32[144,128]{1,0:T(1,128)}', space=vmem, size = 0x12000, scoped, tag = 'internal scratch']
  %s0 = inlined_call_operand.hbm [shape: f32[16,96], index: 0, kind: input, shape index: {}]
  %s1 = inlined_call_operand.hbm [shape: f32[96,96], index: 1, kind: input, shape index: {}]
  %s2 = inlined_call_operand.vmem [shape: f32[1,96], index: 2, kind: input, shape index: {}]
  %s3 = inlined_call_operand.hbm [shape: f32[32,32], index: 3, kind: input, shape index: {}]
  %s4 = inlined_call_operand.vmem [shape: f32[1,32], index: 4, kind: input, shape index: {}]
  %s5 = inlined_call_operand.hbm [shape: f32[16,32], index: 5, kind: output, shape index: {0}]
  %s6 = inlined_call_operand.hbm [shape: f32[16,32], index: 6, kind: output, shape index: {1}]
  %7 = xla_tuple %s5, %s6
  %s8 = sld [smem:[#allocation0]]
  $region50: #{tpu_custom_call.1} parent=0
    _
  %s10 = ssub.s32 1, %s8
  %s11 = scalar_select 0, %s10, %s8
  $region1: #{tpu_custom_call.1} parent=0
    #allocation2 [shape = 'u8[8192]{0}', space=vmem, size = 0x2000, scoped, tag = 'input window, operand 0, single buffered']
    #allocation3 [shape = 's32[1]{0}', space=sflag, size = 0x4, scoped, tag = 'scoped memory for tpu_custom_call.1']
    #allocation4 [shape = 's32[1]{0}', space=sflag, size = 0x4, scoped, tag = 'scoped memory for tpu_custom_call.1']
    #allocation5 [shape = 'u8[49152]{0}', space=vmem, size = 0xc000, scoped, tag = 'input window, operand 1, single buffered']
    #allocation6 [shape = 's32[1]{0}', space=sflag, size = 0x4, scoped, tag = 'scoped memory for tpu_custom_call.1']
    #allocation7 [shape = 'u8[16384]{0}', space=vmem, size = 0x4000, scoped, tag = 'input window, operand 3, single buffered']
    #allocation8 [shape = 'u8[8192]{0}', space=vmem, size = 0x2000, scoped, tag = 'output window, operand 0, single buffered']
    #allocation9 [shape = 'u8[8192]{0}', space=vmem, size = 0x2000, scoped, tag = 'output window, operand 1, single buffered']
    #allocation10 [shape = 's32[1]{0}', space=sflag, size = 0x4, scoped, tag = 'scoped memory for tpu_custom_call.1']
    %12 = vsyncpa [#allocation3], 0
    %13 = vsyncpa [#allocation6], 0
    %14 = vsyncpa [#allocation4], 0
    %15 = vsyncpa [#allocation10], 0
    // Predicated region
    $region2: #{tpu_custom_call.1} parent=1 // pred_check
      _
    $region3: #{tpu_custom_call.1} parent=1 // pred_check_branch
      %17 = sbr.rel (0) target = $region5
    $region4: #{tpu_custom_call.1} parent=1 // pred_region
      %s19 = ssub.s32 256, 256
      %20 = vsyncadd [#allocation3], %s19
      %s21 = sshll.u32 [#allocation2], 4
      %s22 = int_to_ptr.vmem [resolvable:$true] %s21
      %27 = dma.hbm_to_vmem [thread:$0]  %s0, 256, %s22, [#allocation3], 128, 128, 8
    $region5: #{tpu_custom_call.1} parent=1 // pred_fallthru
      _
    // Predicated region
    $region6: #{tpu_custom_call.1} parent=1 // pred_check
      _
    $region7: #{tpu_custom_call.1} parent=1 // pred_check_branch
      %29 = sbr.rel (0) target = $region9
    $region8: #{tpu_custom_call.1} parent=1 // pred_region
      %s31 = ssub.s32 1536, 1536
      %32 = vsyncadd [#allocation6], %s31
      %s33 = sshll.u32 [#allocation5], 4
      %s34 = int_to_ptr.vmem [resolvable:$true] %s33
      %39 = dma.hbm_to_vmem [thread:$0]  %s1, 1536, %s34, [#allocation6], 128, 128, 8
    $region9: #{tpu_custom_call.1} parent=1 // pred_fallthru
      _
    // Predicated region
    $region10: #{tpu_custom_call.1} parent=1 // pred_check
      _
    $region11: #{tpu_custom_call.1} parent=1 // pred_check_branch
      %41 = sbr.rel (0) target = $region13
    $region12: #{tpu_custom_call.1} parent=1 // pred_region
      _
    $region13: #{tpu_custom_call.1} parent=1 // pred_fallthru
      _
    // Predicated region
    $region14: #{tpu_custom_call.1} parent=1 // pred_check
      _
    $region15: #{tpu_custom_call.1} parent=1 // pred_check_branch
      %43 = sbr.rel (0) target = $region17
    $region16: #{tpu_custom_call.1} parent=1 // pred_region
      %s45 = ssub.s32 512, 512
      %46 = vsyncadd [#allocation6], %s45
      %s47 = sshll.u32 [#allocation7], 4
      %s48 = int_to_ptr.vmem [resolvable:$true] %s47
      %53 = dma.hbm_to_vmem [thread:$0]  %s3, 512, %s48, [#allocation6], 128, 128, 8
    $region17: #{tpu_custom_call.1} parent=1 // pred_fallthru
      _
    // Predicated region
    $region18: #{tpu_custom_call.1} parent=1 // pred_check
      _
    $region19: #{tpu_custom_call.1} parent=1 // pred_check_branch
      %55 = sbr.rel (0) target = $region21
    $region20: #{tpu_custom_call.1} parent=1 // pred_region
      _
    $region21: #{tpu_custom_call.1} parent=1 // pred_fallthru
      _
    // Predicated region
    $region22: #{tpu_custom_call.1} parent=1 // pred_check
      _
    $region23: #{tpu_custom_call.1} parent=1 // pred_check_branch
      %57 = sbr.rel (0) target = $region25
    $region24: #{tpu_custom_call.1} parent=1 // pred_region
      %58 = dma.done [#allocation3], 256
    $region25: #{tpu_custom_call.1} parent=1 // pred_fallthru
      _
    // Predicated region
    $region26: #{tpu_custom_call.1} parent=1 // pred_check
      _
    $region27: #{tpu_custom_call.1} parent=1 // pred_check_branch
      %60 = sbr.rel (0) target = $region29
    $region28: #{tpu_custom_call.1} parent=1 // pred_region
      %61 = dma.done [#allocation6], 1536
    $region29: #{tpu_custom_call.1} parent=1 // pred_fallthru
      _
    // Predicated region
    $region30: #{tpu_custom_call.1} parent=1 // pred_check
      _
    $region31: #{tpu_custom_call.1} parent=1 // pred_check_branch
      %63 = sbr.rel (0) target = $region33
    $region32: #{tpu_custom_call.1} parent=1 // pred_region
      %64 = dma.done [#allocation6], 512
    $region33: #{tpu_custom_call.1} parent=1 // pred_fallthru
      _
    %v65 = vld [vmem:[#allocation2] sm:$0xff]
    %v66 = vld [vmem:[#allocation2 + $0x8] sm:$0xff]
    %v67 = vld [vmem:[#allocation5] sm:$0xff]
    %v68 = vld [vmem:[#allocation5 + $0x8] sm:$0xff]
    %v69 = vld [vmem:[#allocation5 + $0x10] sm:$0xff]
    %v70 = vld [vmem:[#allocation5 + $0x18] sm:$0xff]
    %v71 = vld [vmem:[#allocation5 + $0x20] sm:$0xff]
    %v72 = vld [vmem:[#allocation5 + $0x28] sm:$0xff]
    %v73 = vld [vmem:[#allocation5 + $0x30] sm:$0xff]
    %v74 = vld [vmem:[#allocation5 + $0x38] sm:$0xff]
    %v75 = vld [vmem:[#allocation5 + $0x40] sm:$0xff]
    %v76 = vld [vmem:[#allocation5 + $0x48] sm:$0xff]
    %v77 = vld [vmem:[#allocation5 + $0x50] sm:$0xff]
    %v78 = vld [vmem:[#allocation5 + $0x58] sm:$0xff]
    %v79 = vld [vmem:[%s2] sm:$0x1]
    %v81 = vlaneseq
    %v82 = vshrl.u32 %v81, 7
    %v83 = vsub.s32 0, %v82
    %v84 = vrot.slane %v79, %v83
    %vm86 = vcmask 785408
    %v88 = vsel %vm86, %v65, 0
    %v91 = vsel %vm86, %v66, 0
    %93 = vmatprep.subr.mxu0 0.0
    %94 = vmatpush1.msra.mxu0 %v67
    %95 = vmatprep.subr.mxu0 0.0
    %96 = vmatpush1.msra.mxu0 %v68
    %97 = vmatprep.subr.mxu0 0.0
    %98 = vmatpush1.msra.mxu0 %v69
    %99 = vmatprep.subr.mxu0 0.0
    %100 = vmatpush1.msra.mxu0 %v70
    %101 = vmatprep.subr.mxu0 0.0
    %102 = vmatpush1.msra.mxu0 %v71
    %103 = vmatprep.subr.mxu0 0.0
    %104 = vmatpush1.msra.mxu0 %v72
    %105 = vmatprep.subr.mxu0 0.0
    %106 = vmatpush1.msra.mxu0 %v73
    %107 = vmatprep.subr.mxu0 0.0
    %108 = vmatpush1.msra.mxu0 %v74
    %109 = vmatprep.subr.mxu0 0.0
    %110 = vmatpush1.msra.mxu0 %v75
    %111 = vmatprep.subr.mxu0 0.0
    %112 = vmatpush1.msra.mxu0 %v76
    %113 = vmatprep.subr.mxu0 0.0
    %114 = vmatpush1.msra.mxu0 %v77
    %115 = vmatprep.subr.mxu0 0.0
    %116 = vmatpush1.msra.mxu0 %v78
    %117 = vmatprep.subr.mxu0 0.0
    %118 = vmatpush1.msra.mxu0 0.0
    %119 = vmatprep.subr.mxu0 0.0
    %120 = vmatpush1.msra.mxu0 0.0
    %121 = vmatprep.subr.mxu0 0.0
    %122 = vmatpush1.msra.mxu0 0.0
    %123 = vmatprep.subr.mxu0 0.0
    %124 = vmatpush1.msra.mxu0 0.0
    %125 = vmatprep.subr.mxu0 0.0
    %126 = vmatpush1.msra.mxu0 0.0
    %127 = vmatprep.subr.mxu0 0.0
    %128 = vmatpush1.msra.mxu0 0.0
    %129 = vmatprep.subr.mxu0 0.0
    %130 = vmatpush1.msra.mxu0 0.0
    %131 = vmatprep.subr.mxu0 0.0
    %132 = vmatpush1.msra.mxu0 0.0
    %133 = vmatprep.subr.mxu0 0.0
    %134 = vmatpush1.msra.mxu0 0.0
    %135 = vmatprep.subr.mxu0 0.0
    %136 = vmatpush1.msra.mxu0 0.0
    %137 = vmatprep.subr.mxu0 0.0
    %138 = vmatpush1.msra.mxu0 0.0
    %139 = vmatprep.subr.mxu0 0.0
    %140 = vmatpush1.msra.mxu0 0.0
    %141 = vmatprep.subr.mxu0 0.0
    %142 = vmatpush1.msra.mxu0 0.0
    %143 = vmatprep.subr.mxu0 0.0
    %144 = vmatpush1.msra.mxu0 0.0
    %145 = vmatprep.subr.mxu0 0.0
    %146 = vmatpush1.msra.mxu0 0.0
    %147 = vmatprep.subr.mxu0 0.0
    %148 = vmatpush1.msra.mxu0 0.0
    %149 = vmatprep.subr.mxu0 0.0
    %150 = vmatpush1.msra.mxu0 0.0
    %151 = vmatprep.subr.mxu0 0.0
    %152 = vmatpush1.msra.mxu0 0.0
    %153 = vmatprep.subr.mxu0 0.0
    %154 = vmatpush1.msra.mxu0 0.0
    %155 = vmatprep.subr.mxu0 0.0
    %156 = vmatpush1.msra.mxu0 0.0
    %157 = vmatprep.mubr.f32.mxu0 0.0
    %158 = vmatmul.mubr.f32.gmra.mrb[0].mxu0 %v88
    %v159 = vpop.f32.mrb[0].mxu0
    %v160 = vadd.f32 %v84, %v159
    %v161 = vpop.f32.mrb[0].mxu0
    %162 = vmatprep.mubr.f32.mxu0 0.0
    %163 = vmatmul.mubr.f32.gmra.mrb[0].mxu0 %v91
    %v164 = vpop.f32.mrb[0].mxu0
    %v165 = vadd.f32 %v84, %v164
    %v166 = vpop.f32.mrb[0].mxu0
    %167 = vdwg.mxu0
    %169 = vrot.lane.b32.xlu0 %v160, 96
    %v170 = vpop.permute.xlu0 %169
    %vm171 = vcmask 64512
    %v172 = vsel %vm171, %v160, 0
    %v174 = vsel %vm171, %v170, 0
    %176 = vmatprep.subr.mxu0 0.0
    %177 = vmatpush1.xpose.msra.mxu0 %v174
    %178 = vmatprep.subr.mxu0 0.0
    %179 = vmatpush1.xpose.msra.mxu0 0.0
    %180 = vmatprep.subr.mxu0 0.0
    %181 = vmatpush1.xpose.msra.mxu0 0.0
    %182 = vmatprep.subr.mxu0 0.0
    %183 = vmatpush1.xpose.msra.mxu0 0.0
    %184 = vmatprep.subr.mxu0 0.0
    %185 = vmatpush1.xpose.msra.mxu0 0.0
    %186 = vmatprep.subr.mxu0 0.0
    %187 = vmatpush1.xpose.msra.mxu0 0.0
    %188 = vmatprep.subr.mxu0 0.0
    %189 = vmatpush1.xpose.msra.mxu0 0.0
    %190 = vmatprep.subr.mxu0 0.0
    %191 = vmatpush1.xpose.msra.mxu0 0.0
    %192 = vmatprep.subr.mxu0 0.0
    %193 = vmatpush1.xpose.msra.mxu0 0.0
    %194 = vmatprep.subr.mxu0 0.0
    %195 = vmatpush1.xpose.msra.mxu0 0.0
    %196 = vmatprep.subr.mxu0 0.0
    %197 = vmatpush1.xpose.msra.mxu0 0.0
    %198 = vmatprep.subr.mxu0 0.0
    %199 = vmatpush1.xpose.msra.mxu0 0.0
    %200 = vmatprep.subr.mxu0 0.0
    %201 = vmatpush1.xpose.msra.mxu0 0.0
    %202 = vmatprep.subr.mxu0 0.0
    %203 = vmatpush1.xpose.msra.mxu0 0.0
    %204 = vmatprep.subr.mxu0 0.0
    %205 = vmatpush1.xpose.msra.mxu0 0.0
    %206 = vmatprep.subr.mxu0 0.0
    %207 = vmatpush1.xpose.msra.mxu0 0.0
    %208 = vmatprep.subr.mxu0 0.0
    %209 = vmatpush1.xpose.msra.mxu0 0.0
    %210 = vmatprep.subr.mxu0 0.0
    %211 = vmatpush1.xpose.msra.mxu0 0.0
    %212 = vmatprep.subr.mxu0 0.0
    %213 = vmatpush1.xpose.msra.mxu0 0.0
    %214 = vmatprep.subr.mxu0 0.0
    %215 = vmatpush1.xpose.msra.mxu0 0.0
    %216 = vmatprep.subr.mxu0 0.0
    %217 = vmatpush1.xpose.msra.mxu0 0.0
    %218 = vmatprep.subr.mxu0 0.0
    %219 = vmatpush1.xpose.msra.mxu0 0.0
    %220 = vmatprep.subr.mxu0 0.0
    %221 = vmatpush1.xpose.msra.mxu0 0.0
    %222 = vmatprep.subr.mxu0 0.0
    %223 = vmatpush1.xpose.msra.mxu0 0.0
    %224 = vmatprep.subr.mxu0 0.0
    %225 = vmatpush1.xpose.msra.mxu0 0.0
    %226 = vmatprep.subr.mxu0 0.0
    %227 = vmatpush1.xpose.msra.mxu0 0.0
    %228 = vmatprep.subr.mxu0 0.0
    %229 = vmatpush1.xpose.msra.mxu0 0.0
    %230 = vmatprep.subr.mxu0 0.0
    %231 = vmatpush1.xpose.msra.mxu0 0.0
    %232 = vmatprep.subr.mxu0 0.0
    %233 = vmatpush1.xpose.msra.mxu0 0.0
    %234 = vmatprep.subr.mxu0 0.0
    %235 = vmatpush1.xpose.msra.mxu0 0.0
    %236 = vmatprep.subr.mxu0 0.0
    %237 = vmatpush1.xpose.msra.mxu0 0.0
    %238 = vmatprep.subr.mxu0 0.0
    %239 = vmatpush1.xpose.msra.mxu0 0.0
    %240 = vmatprep.mubr.f32.mxu0 0.0
    %241 = vmatmul.mubr.f32.gmra.mrb[0].mxu0 %v172
    %v242 = vpop.f32.mrb[0].mxu0
    %v243 = vadd.f32 0.0, %v242
    %v244 = vpop.f32.mrb[0].mxu0
    %245 = vdwg.mxu0
    %v246 = vsel %vm171, %v243, -inf
    %247 = vmax.xlane.f32.xlu0 %v246
    %v248 = vpop.xlane.xlu0 %247
    %v249 = vsub.f32 %v243, %v248
    %v250 = vmul.f32 %v249, 1.442695
    %v251 = vpow.pop %v250
    %v252 = vsel %vm171, %v251, 0.0
    %253 = vadd.xlane.f32.xlu0 %v252
    %v254 = vpop.xlane.xlu0 %253
    %v255 = vrcp.pop %v254
    %v256 = vmul.f32 1.0, %v255
    %v257 = vmul.f32 %v251, %v256
    %258 = vrot.lane.b32.xlu0 %v160, 64
    %v259 = vpop.permute.xlu0 %258
    %v262 = vsel %vm171, %v257, 0
    %264 = vmatprep.subr.mxu0 0.0
    %265 = vmatpush1.msra.mxu0 %v259
    %266 = vmatprep.subr.mxu0 0.0
    %267 = vmatpush1.msra.mxu0 0.0
    %268 = vmatprep.subr.mxu0 0.0
    %269 = vmatpush1.msra.mxu0 0.0
    %270 = vmatprep.subr.mxu0 0.0
    %271 = vmatpush1.msra.mxu0 0.0
    %272 = vmatprep.subr.mxu0 0.0
    %273 = vmatpush1.msra.mxu0 0.0
    %274 = vmatprep.subr.mxu0 0.0
    %275 = vmatpush1.msra.mxu0 0.0
    %276 = vmatprep.subr.mxu0 0.0
    %277 = vmatpush1.msra.mxu0 0.0
    %278 = vmatprep.subr.mxu0 0.0
    %279 = vmatpush1.msra.mxu0 0.0
    %280 = vmatprep.subr.mxu0 0.0
    %281 = vmatpush1.msra.mxu0 0.0
    %282 = vmatprep.subr.mxu0 0.0
    %283 = vmatpush1.msra.mxu0 0.0
    %284 = vmatprep.subr.mxu0 0.0
    %285 = vmatpush1.msra.mxu0 0.0
    %286 = vmatprep.subr.mxu0 0.0
    %287 = vmatpush1.msra.mxu0 0.0
    %288 = vmatprep.subr.mxu0 0.0
    %289 = vmatpush1.msra.mxu0 0.0
    %290 = vmatprep.subr.mxu0 0.0
    %291 = vmatpush1.msra.mxu0 0.0
    %292 = vmatprep.subr.mxu0 0.0
    %293 = vmatpush1.msra.mxu0 0.0
    %294 = vmatprep.subr.mxu0 0.0
    %295 = vmatpush1.msra.mxu0 0.0
    %296 = vmatprep.subr.mxu0 0.0
    %297 = vmatpush1.msra.mxu0 0.0
    %298 = vmatprep.subr.mxu0 0.0
    %299 = vmatpush1.msra.mxu0 0.0
    %300 = vmatprep.subr.mxu0 0.0
    %301 = vmatpush1.msra.mxu0 0.0
    %302 = vmatprep.subr.mxu0 0.0
    %303 = vmatpush1.msra.mxu0 0.0
    %304 = vmatprep.subr.mxu0 0.0
    %305 = vmatpush1.msra.mxu0 0.0
    %306 = vmatprep.subr.mxu0 0.0
    %307 = vmatpush1.msra.mxu0 0.0
    %308 = vmatprep.subr.mxu0 0.0
    %309 = vmatpush1.msra.mxu0 0.0
    %310 = vmatprep.subr.mxu0 0.0
    %311 = vmatpush1.msra.mxu0 0.0
    %312 = vmatprep.subr.mxu0 0.0
    %313 = vmatpush1.msra.mxu0 0.0
    %314 = vmatprep.subr.mxu0 0.0
    %315 = vmatpush1.msra.mxu0 0.0
    %316 = vmatprep.subr.mxu0 0.0
    %317 = vmatpush1.msra.mxu0 0.0
    %318 = vmatprep.subr.mxu0 0.0
    %319 = vmatpush1.msra.mxu0 0.0
    %320 = vmatprep.subr.mxu0 0.0
    %321 = vmatpush1.msra.mxu0 0.0
    %322 = vmatprep.subr.mxu0 0.0
    %323 = vmatpush1.msra.mxu0 0.0
    %324 = vmatprep.subr.mxu0 0.0
    %325 = vmatpush1.msra.mxu0 0.0
    %326 = vmatprep.subr.mxu0 0.0
    %327 = vmatpush1.msra.mxu0 0.0
    %328 = vmatprep.mubr.f32.mxu0 0.0
    %329 = vmatmul.mubr.f32.gmra.mrb[0].mxu0 %v262
    %v330 = vpop.f32.mrb[0].mxu0
    %v331 = vadd.f32 0.0, %v330
    %v332 = vpop.f32.mrb[0].mxu0
    %333 = vdwg.mxu0
    %334 = vrot.lane.b32.xlu0 %v160, 120
    %v335 = vpop.permute.xlu0 %334
    %336 = vrot.lane.b32.xlu0 %v160, 88
    %v337 = vpop.permute.xlu0 %336
    %v338 = vsel %vm171, %v335, 0
    %v340 = vsel %vm171, %v337, 0
    %342 = vmatprep.subr.mxu0 0.0
    %343 = vmatpush1.xpose.msra.mxu0 %v340
    %344 = vmatprep.subr.mxu0 0.0
    %345 = vmatpush1.xpose.msra.mxu0 0.0
    %346 = vmatprep.subr.mxu0 0.0
    %347 = vmatpush1.xpose.msra.mxu0 0.0
    %348 = vmatprep.subr.mxu0 0.0
    %349 = vmatpush1.xpose.msra.mxu0 0.0
    %350 = vmatprep.subr.mxu0 0.0
    %351 = vmatpush1.xpose.msra.mxu0 0.0
    %352 = vmatprep.subr.mxu0 0.0
    %353 = vmatpush1.xpose.msra.mxu0 0.0
    %354 = vmatprep.subr.mxu0 0.0
    %355 = vmatpush1.xpose.msra.mxu0 0.0
    %356 = vmatprep.subr.mxu0 0.0
    %357 = vmatpush1.xpose.msra.mxu0 0.0
    %358 = vmatprep.subr.mxu0 0.0
    %359 = vmatpush1.xpose.msra.mxu0 0.0
    %360 = vmatprep.subr.mxu0 0.0
    %361 = vmatpush1.xpose.msra.mxu0 0.0
    %362 = vmatprep.subr.mxu0 0.0
    %363 = vmatpush1.xpose.msra.mxu0 0.0
    %364 = vmatprep.subr.mxu0 0.0
    %365 = vmatpush1.xpose.msra.mxu0 0.0
    %366 = vmatprep.subr.mxu0 0.0
    %367 = vmatpush1.xpose.msra.mxu0 0.0
    %368 = vmatprep.subr.mxu0 0.0
    %369 = vmatpush1.xpose.msra.mxu0 0.0
    %370 = vmatprep.subr.mxu0 0.0
    %371 = vmatpush1.xpose.msra.mxu0 0.0
    %372 = vmatprep.subr.mxu0 0.0
    %373 = vmatpush1.xpose.msra.mxu0 0.0
    %374 = vmatprep.subr.mxu0 0.0
    %375 = vmatpush1.xpose.msra.mxu0 0.0
    %376 = vmatprep.subr.mxu0 0.0
    %377 = vmatpush1.xpose.msra.mxu0 0.0
    %378 = vmatprep.subr.mxu0 0.0
    %379 = vmatpush1.xpose.msra.mxu0 0.0
    %380 = vmatprep.subr.mxu0 0.0
    %381 = vmatpush1.xpose.msra.mxu0 0.0
    %382 = vmatprep.subr.mxu0 0.0
    %383 = vmatpush1.xpose.msra.mxu0 0.0
    %384 = vmatprep.subr.mxu0 0.0
    %385 = vmatpush1.xpose.msra.mxu0 0.0
    %386 = vmatprep.subr.mxu0 0.0
    %387 = vmatpush1.xpose.msra.mxu0 0.0
    %388 = vmatprep.subr.mxu0 0.0
    %389 = vmatpush1.xpose.msra.mxu0 0.0
    %390 = vmatprep.subr.mxu0 0.0
    %391 = vmatpush1.xpose.msra.mxu0 0.0
    %392 = vmatprep.subr.mxu0 0.0
    %393 = vmatpush1.xpose.msra.mxu0 0.0
    %394 = vmatprep.subr.mxu0 0.0
    %395 = vmatpush1.xpose.msra.mxu0 0.0
    %396 = vmatprep.subr.mxu0 0.0
    %397 = vmatpush1.xpose.msra.mxu0 0.0
    %398 = vmatprep.subr.mxu0 0.0
    %399 = vmatpush1.xpose.msra.mxu0 0.0
    %400 = vmatprep.subr.mxu0 0.0
    %401 = vmatpush1.xpose.msra.mxu0 0.0
    %402 = vmatprep.subr.mxu0 0.0
    %403 = vmatpush1.xpose.msra.mxu0 0.0
    %404 = vmatprep.subr.mxu0 0.0
    %405 = vmatpush1.xpose.msra.mxu0 0.0
    %406 = vmatprep.mubr.f32.mxu0 0.0
    %407 = vmatmul.mubr.f32.gmra.mrb[0].mxu0 %v338
    %v408 = vpop.f32.mrb[0].mxu0
    %v409 = vadd.f32 0.0, %v408
    %v410 = vpop.f32.mrb[0].mxu0
    %411 = vdwg.mxu0
    %v412 = vsel %vm171, %v409, -inf
    %413 = vmax.xlane.f32.xlu0 %v412
    %v414 = vpop.xlane.xlu0 %413
    %v415 = vsub.f32 %v409, %v414
    %v416 = vmul.f32 %v415, 1.442695
    %v417 = vpow.pop %v416
    %v418 = vsel %vm171, %v417, 0.0
    %419 = vadd.xlane.f32.xlu0 %v418
    %v420 = vpop.xlane.xlu0 %419
    %v421 = vrcp.pop %v420
    %v422 = vmul.f32 1.0, %v421
    %v423 = vmul.f32 %v417, %v422
    %424 = vrot.lane.b32.xlu0 %v160, 56
    %v425 = vpop.permute.xlu0 %424
    %v428 = vsel %vm171, %v423, 0
    %430 = vmatprep.subr.mxu0 0.0
    %431 = vmatpush1.msra.mxu0 %v425
    %432 = vmatprep.subr.mxu0 0.0
    %433 = vmatpush1.msra.mxu0 0.0
    %434 = vmatprep.subr.mxu0 0.0
    %435 = vmatpush1.msra.mxu0 0.0
    %436 = vmatprep.subr.mxu0 0.0
    %437 = vmatpush1.msra.mxu0 0.0
    %438 = vmatprep.subr.mxu0 0.0
    %439 = vmatpush1.msra.mxu0 0.0
    %440 = vmatprep.subr.mxu0 0.0
    %441 = vmatpush1.msra.mxu0 0.0
    %442 = vmatprep.subr.mxu0 0.0
    %443 = vmatpush1.msra.mxu0 0.0
    %444 = vmatprep.subr.mxu0 0.0
    %445 = vmatpush1.msra.mxu0 0.0
    %446 = vmatprep.subr.mxu0 0.0
    %447 = vmatpush1.msra.mxu0 0.0
    %448 = vmatprep.subr.mxu0 0.0
    %449 = vmatpush1.msra.mxu0 0.0
    %450 = vmatprep.subr.mxu0 0.0
    %451 = vmatpush1.msra.mxu0 0.0
    %452 = vmatprep.subr.mxu0 0.0
    %453 = vmatpush1.msra.mxu0 0.0
    %454 = vmatprep.subr.mxu0 0.0
    %455 = vmatpush1.msra.mxu0 0.0
    %456 = vmatprep.subr.mxu0 0.0
    %457 = vmatpush1.msra.mxu0 0.0
    %458 = vmatprep.subr.mxu0 0.0
    %459 = vmatpush1.msra.mxu0 0.0
    %460 = vmatprep.subr.mxu0 0.0
    %461 = vmatpush1.msra.mxu0 0.0
    %462 = vmatprep.subr.mxu0 0.0
    %463 = vmatpush1.msra.mxu0 0.0
    %464 = vmatprep.subr.mxu0 0.0
    %465 = vmatpush1.msra.mxu0 0.0
    %466 = vmatprep.subr.mxu0 0.0
    %467 = vmatpush1.msra.mxu0 0.0
    %468 = vmatprep.subr.mxu0 0.0
    %469 = vmatpush1.msra.mxu0 0.0
    %470 = vmatprep.subr.mxu0 0.0
    %471 = vmatpush1.msra.mxu0 0.0
    %472 = vmatprep.subr.mxu0 0.0
    %473 = vmatpush1.msra.mxu0 0.0
    %474 = vmatprep.subr.mxu0 0.0
    %475 = vmatpush1.msra.mxu0 0.0
    %476 = vmatprep.subr.mxu0 0.0
    %477 = vmatpush1.msra.mxu0 0.0
    %478 = vmatprep.subr.mxu0 0.0
    %479 = vmatpush1.msra.mxu0 0.0
    %480 = vmatprep.subr.mxu0 0.0
    %481 = vmatpush1.msra.mxu0 0.0
    %482 = vmatprep.subr.mxu0 0.0
    %483 = vmatpush1.msra.mxu0 0.0
    %484 = vmatprep.subr.mxu0 0.0
    %485 = vmatpush1.msra.mxu0 0.0
    %486 = vmatprep.subr.mxu0 0.0
    %487 = vmatpush1.msra.mxu0 0.0
    %488 = vmatprep.subr.mxu0 0.0
    %489 = vmatpush1.msra.mxu0 0.0
    %490 = vmatprep.subr.mxu0 0.0
    %491 = vmatpush1.msra.mxu0 0.0
    %492 = vmatprep.subr.mxu0 0.0
    %493 = vmatpush1.msra.mxu0 0.0
    %494 = vmatprep.mubr.f32.mxu0 0.0
    %495 = vmatmul.mubr.f32.gmra.mrb[0].mxu0 %v428
    %v496 = vpop.f32.mrb[0].mxu0
    %v497 = vadd.f32 0.0, %v496
    %v498 = vpop.f32.mrb[0].mxu0
    %499 = vdwg.mxu0
    %500 = vrot.lane.b32.xlu0 %v160, 112
    %v501 = vpop.permute.xlu0 %500
    %502 = vrot.lane.b32.xlu0 %v160, 80
    %v503 = vpop.permute.xlu0 %502
    %v504 = vsel %vm171, %v501, 0
    %v506 = vsel %vm171, %v503, 0
    %508 = vmatprep.subr.mxu0 0.0
    %509 = vmatpush1.xpose.msra.mxu0 %v506
    %510 = vmatprep.subr.mxu0 0.0
    %511 = vmatpush1.xpose.msra.mxu0 0.0
    %512 = vmatprep.subr.mxu0 0.0
    %513 = vmatpush1.xpose.msra.mxu0 0.0
    %514 = vmatprep.subr.mxu0 0.0
    %515 = vmatpush1.xpose.msra.mxu0 0.0
    %516 = vmatprep.subr.mxu0 0.0
    %517 = vmatpush1.xpose.msra.mxu0 0.0
    %518 = vmatprep.subr.mxu0 0.0
    %519 = vmatpush1.xpose.msra.mxu0 0.0
    %520 = vmatprep.subr.mxu0 0.0
    %521 = vmatpush1.xpose.msra.mxu0 0.0
    %522 = vmatprep.subr.mxu0 0.0
    %523 = vmatpush1.xpose.msra.mxu0 0.0
    %524 = vmatprep.subr.mxu0 0.0
    %525 = vmatpush1.xpose.msra.mxu0 0.0
    %526 = vmatprep.subr.mxu0 0.0
    %527 = vmatpush1.xpose.msra.mxu0 0.0
    %528 = vmatprep.subr.mxu0 0.0
    %529 = vmatpush1.xpose.msra.mxu0 0.0
    %530 = vmatprep.subr.mxu0 0.0
    %531 = vmatpush1.xpose.msra.mxu0 0.0
    %532 = vmatprep.subr.mxu0 0.0
    %533 = vmatpush1.xpose.msra.mxu0 0.0
    %534 = vmatprep.subr.mxu0 0.0
    %535 = vmatpush1.xpose.msra.mxu0 0.0
    %536 = vmatprep.subr.mxu0 0.0
    %537 = vmatpush1.xpose.msra.mxu0 0.0
    %538 = vmatprep.subr.mxu0 0.0
    %539 = vmatpush1.xpose.msra.mxu0 0.0
    %540 = vmatprep.subr.mxu0 0.0
    %541 = vmatpush1.xpose.msra.mxu0 0.0
    %542 = vmatprep.subr.mxu0 0.0
    %543 = vmatpush1.xpose.msra.mxu0 0.0
    %544 = vmatprep.subr.mxu0 0.0
    %545 = vmatpush1.xpose.msra.mxu0 0.0
    %546 = vmatprep.subr.mxu0 0.0
    %547 = vmatpush1.xpose.msra.mxu0 0.0
    %548 = vmatprep.subr.mxu0 0.0
    %549 = vmatpush1.xpose.msra.mxu0 0.0
    %550 = vmatprep.subr.mxu0 0.0
    %551 = vmatpush1.xpose.msra.mxu0 0.0
    %552 = vmatprep.subr.mxu0 0.0
    %553 = vmatpush1.xpose.msra.mxu0 0.0
    %554 = vmatprep.subr.mxu0 0.0
    %555 = vmatpush1.xpose.msra.mxu0 0.0
    %556 = vmatprep.subr.mxu0 0.0
    %557 = vmatpush1.xpose.msra.mxu0 0.0
    %558 = vmatprep.subr.mxu0 0.0
    %559 = vmatpush1.xpose.msra.mxu0 0.0
    %560 = vmatprep.subr.mxu0 0.0
    %561 = vmatpush1.xpose.msra.mxu0 0.0
    %562 = vmatprep.subr.mxu0 0.0
    %563 = vmatpush1.xpose.msra.mxu0 0.0
    %564 = vmatprep.subr.mxu0 0.0
    %565 = vmatpush1.xpose.msra.mxu0 0.0
    %566 = vmatprep.subr.mxu0 0.0
    %567 = vmatpush1.xpose.msra.mxu0 0.0
    %568 = vmatprep.subr.mxu0 0.0
    %569 = vmatpush1.xpose.msra.mxu0 0.0
    %570 = vmatprep.subr.mxu0 0.0
    %571 = vmatpush1.xpose.msra.mxu0 0.0
    %572 = vmatprep.mubr.f32.mxu0 0.0
    %573 = vmatmul.mubr.f32.gmra.mrb[0].mxu0 %v504
    %v574 = vpop.f32.mrb[0].mxu0
    %v575 = vadd.f32 0.0, %v574
    %v576 = vpop.f32.mrb[0].mxu0
    %577 = vdwg.mxu0
    %v578 = vsel %vm171, %v575, -inf
    %579 = vmax.xlane.f32.xlu0 %v578
    %v580 = vpop.xlane.xlu0 %579
    %v581 = vsub.f32 %v575, %v580
    %v582 = vmul.f32 %v581, 1.442695
    %v583 = vpow.pop %v582
    %v584 = vsel %vm171, %v583, 0.0
    %585 = vadd.xlane.f32.xlu0 %v584
    %v586 = vpop.xlane.xlu0 %585
    %v587 = vrcp.pop %v586
    %v588 = vmul.f32 1.0, %v587
    %v589 = vmul.f32 %v583, %v588
    %590 = vrot.lane.b32.xlu0 %v160, 48
    %v591 = vpop.permute.xlu0 %590
    %v594 = vsel %vm171, %v589, 0
    %596 = vmatprep.subr.mxu0 0.0
    %597 = vmatpush1.msra.mxu0 %v591
    %598 = vmatprep.subr.mxu0 0.0
    %599 = vmatpush1.msra.mxu0 0.0
    %600 = vmatprep.subr.mxu0 0.0
    %601 = vmatpush1.msra.mxu0 0.0
    %602 = vmatprep.subr.mxu0 0.0
    %603 = vmatpush1.msra.mxu0 0.0
    %604 = vmatprep.subr.mxu0 0.0
    %605 = vmatpush1.msra.mxu0 0.0
    %606 = vmatprep.subr.mxu0 0.0
    %607 = vmatpush1.msra.mxu0 0.0
    %608 = vmatprep.subr.mxu0 0.0
    %609 = vmatpush1.msra.mxu0 0.0
    %610 = vmatprep.subr.mxu0 0.0
    %611 = vmatpush1.msra.mxu0 0.0
    %612 = vmatprep.subr.mxu0 0.0
    %613 = vmatpush1.msra.mxu0 0.0
    %614 = vmatprep.subr.mxu0 0.0
    %615 = vmatpush1.msra.mxu0 0.0
    %616 = vmatprep.subr.mxu0 0.0
    %617 = vmatpush1.msra.mxu0 0.0
    %618 = vmatprep.subr.mxu0 0.0
    %619 = vmatpush1.msra.mxu0 0.0
    %620 = vmatprep.subr.mxu0 0.0
    %621 = vmatpush1.msra.mxu0 0.0
    %622 = vmatprep.subr.mxu0 0.0
    %623 = vmatpush1.msra.mxu0 0.0
    %624 = vmatprep.subr.mxu0 0.0
    %625 = vmatpush1.msra.mxu0 0.0
    %626 = vmatprep.subr.mxu0 0.0
    %627 = vmatpush1.msra.mxu0 0.0
    %628 = vmatprep.subr.mxu0 0.0
    %629 = vmatpush1.msra.mxu0 0.0
    %630 = vmatprep.subr.mxu0 0.0
    %631 = vmatpush1.msra.mxu0 0.0
    %632 = vmatprep.subr.mxu0 0.0
    %633 = vmatpush1.msra.mxu0 0.0
    %634 = vmatprep.subr.mxu0 0.0
    %635 = vmatpush1.msra.mxu0 0.0
    %636 = vmatprep.subr.mxu0 0.0
    %637 = vmatpush1.msra.mxu0 0.0
    %638 = vmatprep.subr.mxu0 0.0
    %639 = vmatpush1.msra.mxu0 0.0
    %640 = vmatprep.subr.mxu0 0.0
    %641 = vmatpush1.msra.mxu0 0.0
    %642 = vmatprep.subr.mxu0 0.0
    %643 = vmatpush1.msra.mxu0 0.0
    %644 = vmatprep.subr.mxu0 0.0
    %645 = vmatpush1.msra.mxu0 0.0
    %646 = vmatprep.subr.mxu0 0.0
    %647 = vmatpush1.msra.mxu0 0.0
    %648 = vmatprep.subr.mxu0 0.0
    %649 = vmatpush1.msra.mxu0 0.0
    %650 = vmatprep.subr.mxu0 0.0
    %651 = vmatpush1.msra.mxu0 0.0
    %652 = vmatprep.subr.mxu0 0.0
    %653 = vmatpush1.msra.mxu0 0.0
    %654 = vmatprep.subr.mxu0 0.0
    %655 = vmatpush1.msra.mxu0 0.0
    %656 = vmatprep.subr.mxu0 0.0
    %657 = vmatpush1.msra.mxu0 0.0
    %658 = vmatprep.subr.mxu0 0.0
    %659 = vmatpush1.msra.mxu0 0.0
    %660 = vmatprep.mubr.f32.mxu0 0.0
    %661 = vmatmul.mubr.f32.gmra.mrb[0].mxu0 %v594
    %v662 = vpop.f32.mrb[0].mxu0
    %v663 = vadd.f32 0.0, %v662
    %v664 = vpop.f32.mrb[0].mxu0
    %665 = vdwg.mxu0
    %666 = vrot.lane.b32.xlu0 %v160, 104
    %v667 = vpop.permute.xlu0 %666
    %668 = vrot.lane.b32.xlu0 %v160, 72
    %v669 = vpop.permute.xlu0 %668
    %v670 = vsel %vm171, %v667, 0
    %v672 = vsel %vm171, %v669, 0
    %674 = vmatprep.subr.mxu0 0.0
    %675 = vmatpush1.xpose.msra.mxu0 %v672
    %676 = vmatprep.subr.mxu0 0.0
    %677 = vmatpush1.xpose.msra.mxu0 0.0
    %678 = vmatprep.subr.mxu0 0.0
    %679 = vmatpush1.xpose.msra.mxu0 0.0
    %680 = vmatprep.subr.mxu0 0.0
    %681 = vmatpush1.xpose.msra.mxu0 0.0
    %682 = vmatprep.subr.mxu0 0.0
    %683 = vmatpush1.xpose.msra.mxu0 0.0
    %684 = vmatprep.subr.mxu0 0.0
    %685 = vmatpush1.xpose.msra.mxu0 0.0
    %686 = vmatprep.subr.mxu0 0.0
    %687 = vmatpush1.xpose.msra.mxu0 0.0
    %688 = vmatprep.subr.mxu0 0.0
    %689 = vmatpush1.xpose.msra.mxu0 0.0
    %690 = vmatprep.subr.mxu0 0.0
    %691 = vmatpush1.xpose.msra.mxu0 0.0
    %692 = vmatprep.subr.mxu0 0.0
    %693 = vmatpush1.xpose.msra.mxu0 0.0
    %694 = vmatprep.subr.mxu0 0.0
    %695 = vmatpush1.xpose.msra.mxu0 0.0
    %696 = vmatprep.subr.mxu0 0.0
    %697 = vmatpush1.xpose.msra.mxu0 0.0
    %698 = vmatprep.subr.mxu0 0.0
    %699 = vmatpush1.xpose.msra.mxu0 0.0
    %700 = vmatprep.subr.mxu0 0.0
    %701 = vmatpush1.xpose.msra.mxu0 0.0
    %702 = vmatprep.subr.mxu0 0.0
    %703 = vmatpush1.xpose.msra.mxu0 0.0
    %704 = vmatprep.subr.mxu0 0.0
    %705 = vmatpush1.xpose.msra.mxu0 0.0
    %706 = vmatprep.subr.mxu0 0.0
    %707 = vmatpush1.xpose.msra.mxu0 0.0
    %708 = vmatprep.subr.mxu0 0.0
    %709 = vmatpush1.xpose.msra.mxu0 0.0
    %710 = vmatprep.subr.mxu0 0.0
    %711 = vmatpush1.xpose.msra.mxu0 0.0
    %712 = vmatprep.subr.mxu0 0.0
    %713 = vmatpush1.xpose.msra.mxu0 0.0
    %714 = vmatprep.subr.mxu0 0.0
    %715 = vmatpush1.xpose.msra.mxu0 0.0
    %716 = vmatprep.subr.mxu0 0.0
    %717 = vmatpush1.xpose.msra.mxu0 0.0
    %718 = vmatprep.subr.mxu0 0.0
    %719 = vmatpush1.xpose.msra.mxu0 0.0
    %720 = vmatprep.subr.mxu0 0.0
    %721 = vmatpush1.xpose.msra.mxu0 0.0
    %722 = vmatprep.subr.mxu0 0.0
    %723 = vmatpush1.xpose.msra.mxu0 0.0
    %724 = vmatprep.subr.mxu0 0.0
    %725 = vmatpush1.xpose.msra.mxu0 0.0
    %726 = vmatprep.subr.mxu0 0.0
    %727 = vmatpush1.xpose.msra.mxu0 0.0
    %728 = vmatprep.subr.mxu0 0.0
    %729 = vmatpush1.xpose.msra.mxu0 0.0
    %730 = vmatprep.subr.mxu0 0.0
    %731 = vmatpush1.xpose.msra.mxu0 0.0
    %732 = vmatprep.subr.mxu0 0.0
    %733 = vmatpush1.xpose.msra.mxu0 0.0
    %734 = vmatprep.subr.mxu0 0.0
    %735 = vmatpush1.xpose.msra.mxu0 0.0
    %736 = vmatprep.subr.mxu0 0.0
    %737 = vmatpush1.xpose.msra.mxu0 0.0
    %738 = vmatprep.mubr.f32.mxu0 0.0
    %739 = vmatmul.mubr.f32.gmra.mrb[0].mxu0 %v670
    %v740 = vpop.f32.mrb[0].mxu0
    %v741 = vadd.f32 0.0, %v740
    %v742 = vpop.f32.mrb[0].mxu0
    %743 = vdwg.mxu0
    %v744 = vsel %vm171, %v741, -inf
    %745 = vmax.xlane.f32.xlu0 %v744
    %v746 = vpop.xlane.xlu0 %745
    %v747 = vsub.f32 %v741, %v746
    %v748 = vmul.f32 %v747, 1.442695
    %v749 = vpow.pop %v748
    %v750 = vsel %vm171, %v749, 0.0
    %751 = vadd.xlane.f32.xlu0 %v750
    %v752 = vpop.xlane.xlu0 %751
    %v753 = vrcp.pop %v752
    %v754 = vmul.f32 1.0, %v753
    %v755 = vmul.f32 %v749, %v754
    %756 = vrot.lane.b32.xlu0 %v160, 40
    %v757 = vpop.permute.xlu0 %756
    %v760 = vsel %vm171, %v755, 0
    %762 = vmatprep.subr.mxu0 0.0
    %763 = vmatpush1.msra.mxu0 %v757
    %764 = vmatprep.subr.mxu0 0.0
    %765 = vmatpush1.msra.mxu0 0.0
    %766 = vmatprep.subr.mxu0 0.0
    %767 = vmatpush1.msra.mxu0 0.0
    %768 = vmatprep.subr.mxu0 0.0
    %769 = vmatpush1.msra.mxu0 0.0
    %770 = vmatprep.subr.mxu0 0.0
    %771 = vmatpush1.msra.mxu0 0.0
    %772 = vmatprep.subr.mxu0 0.0
    %773 = vmatpush1.msra.mxu0 0.0
    %774 = vmatprep.subr.mxu0 0.0
    %775 = vmatpush1.msra.mxu0 0.0
    %776 = vmatprep.subr.mxu0 0.0
    %777 = vmatpush1.msra.mxu0 0.0
    %778 = vmatprep.subr.mxu0 0.0
    %779 = vmatpush1.msra.mxu0 0.0
    %780 = vmatprep.subr.mxu0 0.0
    %781 = vmatpush1.msra.mxu0 0.0
    %782 = vmatprep.subr.mxu0 0.0
    %783 = vmatpush1.msra.mxu0 0.0
    %784 = vmatprep.subr.mxu0 0.0
    %785 = vmatpush1.msra.mxu0 0.0
    %786 = vmatprep.subr.mxu0 0.0
    %787 = vmatpush1.msra.mxu0 0.0
    %788 = vmatprep.subr.mxu0 0.0
    %789 = vmatpush1.msra.mxu0 0.0
    %790 = vmatprep.subr.mxu0 0.0
    %791 = vmatpush1.msra.mxu0 0.0
    %792 = vmatprep.subr.mxu0 0.0
    %793 = vmatpush1.msra.mxu0 0.0
    %794 = vmatprep.subr.mxu0 0.0
    %795 = vmatpush1.msra.mxu0 0.0
    %796 = vmatprep.subr.mxu0 0.0
    %797 = vmatpush1.msra.mxu0 0.0
    %798 = vmatprep.subr.mxu0 0.0
    %799 = vmatpush1.msra.mxu0 0.0
    %800 = vmatprep.subr.mxu0 0.0
    %801 = vmatpush1.msra.mxu0 0.0
    %802 = vmatprep.subr.mxu0 0.0
    %803 = vmatpush1.msra.mxu0 0.0
    %804 = vmatprep.subr.mxu0 0.0
    %805 = vmatpush1.msra.mxu0 0.0
    %806 = vmatprep.subr.mxu0 0.0
    %807 = vmatpush1.msra.mxu0 0.0
    %808 = vmatprep.subr.mxu0 0.0
    %809 = vmatpush1.msra.mxu0 0.0
    %810 = vmatprep.subr.mxu0 0.0
    %811 = vmatpush1.msra.mxu0 0.0
    %812 = vmatprep.subr.mxu0 0.0
    %813 = vmatpush1.msra.mxu0 0.0
    %814 = vmatprep.subr.mxu0 0.0
    %815 = vmatpush1.msra.mxu0 0.0
    %816 = vmatprep.subr.mxu0 0.0
    %817 = vmatpush1.msra.mxu0 0.0
    %818 = vmatprep.subr.mxu0 0.0
    %819 = vmatpush1.msra.mxu0 0.0
    %820 = vmatprep.subr.mxu0 0.0
    %821 = vmatpush1.msra.mxu0 0.0
    %822 = vmatprep.subr.mxu0 0.0
    %823 = vmatpush1.msra.mxu0 0.0
    %824 = vmatprep.subr.mxu0 0.0
    %825 = vmatpush1.msra.mxu0 0.0
    %826 = vmatprep.mubr.f32.mxu0 0.0
    %827 = vmatmul.mubr.f32.gmra.mrb[0].mxu0 %v760
    %v828 = vpop.f32.mrb[0].mxu0
    %v829 = vadd.f32 0.0, %v828
    %v830 = vpop.f32.mrb[0].mxu0
    %831 = vdwg.mxu0
    %833 = vrot.lane.b32.xlu0 %v497, 8
    %v834 = vpop.permute.xlu0 %833
    %837 = vrot.lane.b32.xlu0 %v663, 16
    %v838 = vpop.permute.xlu0 %837
    %841 = vrot.lane.b32.xlu0 %v829, 24
    %v842 = vpop.permute.xlu0 %841
    %v844 = vsel %vm171, %v331, %v834
    %vm845 = vcmask 130048
    %v846 = vsel %vm845, %v844, %v838
    %vm847 = vcmask 195584
    %v848 = vsel %vm847, %v846, %v842
    %849 = vrot.lane.b32.xlu0 %v423, 8
    %v850 = vpop.permute.xlu0 %849
    %852 = vrot.lane.b32.xlu0 %v589, 16
    %v853 = vpop.permute.xlu0 %852
    %855 = vrot.lane.b32.xlu0 %v755, 24
    %v856 = vpop.permute.xlu0 %855
    %v858 = vsel %vm171, %v257, %v850
    %v859 = vsel %vm845, %v858, %v853
    %v860 = vsel %vm847, %v859, %v856
    %862 = vrot.lane.b32.xlu0 %v165, 96
    %v863 = vpop.permute.xlu0 %862
    %v864 = vsel %vm171, %v165, 0
    %v866 = vsel %vm171, %v863, 0
    %868 = vmatprep.subr.mxu0 0.0
    %869 = vmatpush1.xpose.msra.mxu0 %v866
    %870 = vmatprep.subr.mxu0 0.0
    %871 = vmatpush1.xpose.msra.mxu0 0.0
    %872 = vmatprep.subr.mxu0 0.0
    %873 = vmatpush1.xpose.msra.mxu0 0.0
    %874 = vmatprep.subr.mxu0 0.0
    %875 = vmatpush1.xpose.msra.mxu0 0.0
    %876 = vmatprep.subr.mxu0 0.0
    %877 = vmatpush1.xpose.msra.mxu0 0.0
    %878 = vmatprep.subr.mxu0 0.0
    %879 = vmatpush1.xpose.msra.mxu0 0.0
    %880 = vmatprep.subr.mxu0 0.0
    %881 = vmatpush1.xpose.msra.mxu0 0.0
    %882 = vmatprep.subr.mxu0 0.0
    %883 = vmatpush1.xpose.msra.mxu0 0.0
    %884 = vmatprep.subr.mxu0 0.0
    %885 = vmatpush1.xpose.msra.mxu0 0.0
    %886 = vmatprep.subr.mxu0 0.0
    %887 = vmatpush1.xpose.msra.mxu0 0.0
    %888 = vmatprep.subr.mxu0 0.0
    %889 = vmatpush1.xpose.msra.mxu0 0.0
    %890 = vmatprep.subr.mxu0 0.0
    %891 = vmatpush1.xpose.msra.mxu0 0.0
    %892 = vmatprep.subr.mxu0 0.0
    %893 = vmatpush1.xpose.msra.mxu0 0.0
    %894 = vmatprep.subr.mxu0 0.0
    %895 = vmatpush1.xpose.msra.mxu0 0.0
    %896 = vmatprep.subr.mxu0 0.0
    %897 = vmatpush1.xpose.msra.mxu0 0.0
    %898 = vmatprep.subr.mxu0 0.0
    %899 = vmatpush1.xpose.msra.mxu0 0.0
    %900 = vmatprep.subr.mxu0 0.0
    %901 = vmatpush1.xpose.msra.mxu0 0.0
    %902 = vmatprep.subr.mxu0 0.0
    %903 = vmatpush1.xpose.msra.mxu0 0.0
    %904 = vmatprep.subr.mxu0 0.0
    %905 = vmatpush1.xpose.msra.mxu0 0.0
    %906 = vmatprep.subr.mxu0 0.0
    %907 = vmatpush1.xpose.msra.mxu0 0.0
    %908 = vmatprep.subr.mxu0 0.0
    %909 = vmatpush1.xpose.msra.mxu0 0.0
    %910 = vmatprep.subr.mxu0 0.0
    %911 = vmatpush1.xpose.msra.mxu0 0.0
    %912 = vmatprep.subr.mxu0 0.0
    %913 = vmatpush1.xpose.msra.mxu0 0.0
    %914 = vmatprep.subr.mxu0 0.0
    %915 = vmatpush1.xpose.msra.mxu0 0.0
    %916 = vmatprep.subr.mxu0 0.0
    %917 = vmatpush1.xpose.msra.mxu0 0.0
    %918 = vmatprep.subr.mxu0 0.0
    %919 = vmatpush1.xpose.msra.mxu0 0.0
    %920 = vmatprep.subr.mxu0 0.0
    %921 = vmatpush1.xpose.msra.mxu0 0.0
    %922 = vmatprep.subr.mxu0 0.0
    %923 = vmatpush1.xpose.msra.mxu0 0.0
    %924 = vmatprep.subr.mxu0 0.0
    %925 = vmatpush1.xpose.msra.mxu0 0.0
    %926 = vmatprep.subr.mxu0 0.0
    %927 = vmatpush1.xpose.msra.mxu0 0.0
    %928 = vmatprep.subr.mxu0 0.0
    %929 = vmatpush1.xpose.msra.mxu0 0.0
    %930 = vmatprep.subr.mxu0 0.0
    %931 = vmatpush1.xpose.msra.mxu0 0.0
    %932 = vmatprep.mubr.f32.mxu0 0.0
    %933 = vmatmul.mubr.f32.gmra.mrb[0].mxu0 %v864
    %v934 = vpop.f32.mrb[0].mxu0
    %v935 = vadd.f32 0.0, %v934
    %v936 = vpop.f32.mrb[0].mxu0
    %937 = vdwg.mxu0
    %v938 = vsel %vm171, %v935, -inf
    %939 = vmax.xlane.f32.xlu0 %v938
    %v940 = vpop.xlane.xlu0 %939
    %v941 = vsub.f32 %v935, %v940
    %v942 = vmul.f32 %v941, 1.442695
    %v943 = vpow.pop %v942
    %v944 = vsel %vm171, %v943, 0.0
    %945 = vadd.xlane.f32.xlu0 %v944
    %v946 = vpop.xlane.xlu0 %945
    %v947 = vrcp.pop %v946
    %v948 = vmul.f32 1.0, %v947
    %v949 = vmul.f32 %v943, %v948
    %950 = vrot.lane.b32.xlu0 %v165, 64
    %v951 = vpop.permute.xlu0 %950
    %v954 = vsel %vm171, %v949, 0
    %956 = vmatprep.subr.mxu0 0.0
    %957 = vmatpush1.msra.mxu0 %v951
    %958 = vmatprep.subr.mxu0 0.0
    %959 = vmatpush1.msra.mxu0 0.0
    %960 = vmatprep.subr.mxu0 0.0
    %961 = vmatpush1.msra.mxu0 0.0
    %962 = vmatprep.subr.mxu0 0.0
    %963 = vmatpush1.msra.mxu0 0.0
    %964 = vmatprep.subr.mxu0 0.0
    %965 = vmatpush1.msra.mxu0 0.0
    %966 = vmatprep.subr.mxu0 0.0
    %967 = vmatpush1.msra.mxu0 0.0
    %968 = vmatprep.subr.mxu0 0.0
    %969 = vmatpush1.msra.mxu0 0.0
    %970 = vmatprep.subr.mxu0 0.0
    %971 = vmatpush1.msra.mxu0 0.0
    %972 = vmatprep.subr.mxu0 0.0
    %973 = vmatpush1.msra.mxu0 0.0
    %974 = vmatprep.subr.mxu0 0.0
    %975 = vmatpush1.msra.mxu0 0.0
    %976 = vmatprep.subr.mxu0 0.0
    %977 = vmatpush1.msra.mxu0 0.0
    %978 = vmatprep.subr.mxu0 0.0
    %979 = vmatpush1.msra.mxu0 0.0
    %980 = vmatprep.subr.mxu0 0.0
    %981 = vmatpush1.msra.mxu0 0.0
    %982 = vmatprep.subr.mxu0 0.0
    %983 = vmatpush1.msra.mxu0 0.0
    %984 = vmatprep.subr.mxu0 0.0
    %985 = vmatpush1.msra.mxu0 0.0
    %986 = vmatprep.subr.mxu0 0.0
    %987 = vmatpush1.msra.mxu0 0.0
    %988 = vmatprep.subr.mxu0 0.0
    %989 = vmatpush1.msra.mxu0 0.0
    %990 = vmatprep.subr.mxu0 0.0
    %991 = vmatpush1.msra.mxu0 0.0
    %992 = vmatprep.subr.mxu0 0.0
    %993 = vmatpush1.msra.mxu0 0.0
    %994 = vmatprep.subr.mxu0 0.0
    %995 = vmatpush1.msra.mxu0 0.0
    %996 = vmatprep.subr.mxu0 0.0
    %997 = vmatpush1.msra.mxu0 0.0
    %998 = vmatprep.subr.mxu0 0.0
    %999 = vmatpush1.msra.mxu0 0.0
    %1000 = vmatprep.subr.mxu0 0.0
    %1001 = vmatpush1.msra.mxu0 0.0
    %1002 = vmatprep.subr.mxu0 0.0
    %1003 = vmatpush1.msra.mxu0 0.0
    %1004 = vmatprep.subr.mxu0 0.0
    %1005 = vmatpush1.msra.mxu0 0.0
    %1006 = vmatprep.subr.mxu0 0.0
    %1007 = vmatpush1.msra.mxu0 0.0
    %1008 = vmatprep.subr.mxu0 0.0
    %1009 = vmatpush1.msra.mxu0 0.0
    %1010 = vmatprep.subr.mxu0 0.0
    %1011 = vmatpush1.msra.mxu0 0.0
    %1012 = vmatprep.subr.mxu0 0.0
    %1013 = vmatpush1.msra.mxu0 0.0
    %1014 = vmatprep.subr.mxu0 0.0
    %1015 = vmatpush1.msra.mxu0 0.0
    %1016 = vmatprep.subr.mxu0 0.0
    %1017 = vmatpush1.msra.mxu0 0.0
    %1018 = vmatprep.subr.mxu0 0.0
    %1019 = vmatpush1.msra.mxu0 0.0
    %1020 = vmatprep.mubr.f32.mxu0 0.0
    %1021 = vmatmul.mubr.f32.gmra.mrb[0].mxu0 %v954
    %v1022 = vpop.f32.mrb[0].mxu0
    %v1023 = vadd.f32 0.0, %v1022
    %v1024 = vpop.f32.mrb[0].mxu0
    %1025 = vdwg.mxu0
    %1026 = vrot.lane.b32.xlu0 %v165, 120
    %v1027 = vpop.permute.xlu0 %1026
    %1028 = vrot.lane.b32.xlu0 %v165, 88
    %v1029 = vpop.permute.xlu0 %1028
    %v1030 = vsel %vm171, %v1027, 0
    %v1032 = vsel %vm171, %v1029, 0
    %1034 = vmatprep.subr.mxu0 0.0
    %1035 = vmatpush1.xpose.msra.mxu0 %v1032
    %1036 = vmatprep.subr.mxu0 0.0
    %1037 = vmatpush1.xpose.msra.mxu0 0.0
    %1038 = vmatprep.subr.mxu0 0.0
    %1039 = vmatpush1.xpose.msra.mxu0 0.0
    %1040 = vmatprep.subr.mxu0 0.0
    %1041 = vmatpush1.xpose.msra.mxu0 0.0
    %1042 = vmatprep.subr.mxu0 0.0
    %1043 = vmatpush1.xpose.msra.mxu0 0.0
    %1044 = vmatprep.subr.mxu0 0.0
    %1045 = vmatpush1.xpose.msra.mxu0 0.0
    %1046 = vmatprep.subr.mxu0 0.0
    %1047 = vmatpush1.xpose.msra.mxu0 0.0
    %1048 = vmatprep.subr.mxu0 0.0
    %1049 = vmatpush1.xpose.msra.mxu0 0.0
    %1050 = vmatprep.subr.mxu0 0.0
    %1051 = vmatpush1.xpose.msra.mxu0 0.0
    %1052 = vmatprep.subr.mxu0 0.0
    %1053 = vmatpush1.xpose.msra.mxu0 0.0
    %1054 = vmatprep.subr.mxu0 0.0
    %1055 = vmatpush1.xpose.msra.mxu0 0.0
    %1056 = vmatprep.subr.mxu0 0.0
    %1057 = vmatpush1.xpose.msra.mxu0 0.0
    %1058 = vmatprep.subr.mxu0 0.0
    %1059 = vmatpush1.xpose.msra.mxu0 0.0
    %1060 = vmatprep.subr.mxu0 0.0
    %1061 = vmatpush1.xpose.msra.mxu0 0.0
    %1062 = vmatprep.subr.mxu0 0.0
    %1063 = vmatpush1.xpose.msra.mxu0 0.0
    %1064 = vmatprep.subr.mxu0 0.0
    %1065 = vmatpush1.xpose.msra.mxu0 0.0
    %1066 = vmatprep.subr.mxu0 0.0
    %1067 = vmatpush1.xpose.msra.mxu0 0.0
    %1068 = vmatprep.subr.mxu0 0.0
    %1069 = vmatpush1.xpose.msra.mxu0 0.0
    %1070 = vmatprep.subr.mxu0 0.0
    %1071 = vmatpush1.xpose.msra.mxu0 0.0
    %1072 = vmatprep.subr.mxu0 0.0
    %1073 = vmatpush1.xpose.msra.mxu0 0.0
    %1074 = vmatprep.subr.mxu0 0.0
    %1075 = vmatpush1.xpose.msra.mxu0 0.0
    %1076 = vmatprep.subr.mxu0 0.0
    %1077 = vmatpush1.xpose.msra.mxu0 0.0
    %1078 = vmatprep.subr.mxu0 0.0
    %1079 = vmatpush1.xpose.msra.mxu0 0.0
    %1080 = vmatprep.subr.mxu0 0.0
    %1081 = vmatpush1.xpose.msra.mxu0 0.0
    %1082 = vmatprep.subr.mxu0 0.0
    %1083 = vmatpush1.xpose.msra.mxu0 0.0
    %1084 = vmatprep.subr.mxu0 0.0
    %1085 = vmatpush1.xpose.msra.mxu0 0.0
    %1086 = vmatprep.subr.mxu0 0.0
    %1087 = vmatpush1.xpose.msra.mxu0 0.0
    %1088 = vmatprep.subr.mxu0 0.0
    %1089 = vmatpush1.xpose.msra.mxu0 0.0
    %1090 = vmatprep.subr.mxu0 0.0
    %1091 = vmatpush1.xpose.msra.mxu0 0.0
    %1092 = vmatprep.subr.mxu0 0.0
    %1093 = vmatpush1.xpose.msra.mxu0 0.0
    %1094 = vmatprep.subr.mxu0 0.0
    %1095 = vmatpush1.xpose.msra.mxu0 0.0
    %1096 = vmatprep.subr.mxu0 0.0
    %1097 = vmatpush1.xpose.msra.mxu0 0.0
    %1098 = vmatprep.mubr.f32.mxu0 0.0
    %1099 = vmatmul.mubr.f32.gmra.mrb[0].mxu0 %v1030
    %v1100 = vpop.f32.mrb[0].mxu0
    %v1101 = vadd.f32 0.0, %v1100
    %v1102 = vpop.f32.mrb[0].mxu0
    %1103 = vdwg.mxu0
    %v1104 = vsel %vm171, %v1101, -inf
    %1105 = vmax.xlane.f32.xlu0 %v1104
    %v1106 = vpop.xlane.xlu0 %1105
    %v1107 = vsub.f32 %v1101, %v1106
    %v1108 = vmul.f32 %v1107, 1.442695
    %v1109 = vpow.pop %v1108
    %v1110 = vsel %vm171, %v1109, 0.0
    %1111 = vadd.xlane.f32.xlu0 %v1110
    %v1112 = vpop.xlane.xlu0 %1111
    %v1113 = vrcp.pop %v1112
    %v1114 = vmul.f32 1.0, %v1113
    %v1115 = vmul.f32 %v1109, %v1114
    %1116 = vrot.lane.b32.xlu0 %v165, 56
    %v1117 = vpop.permute.xlu0 %1116
    %v1120 = vsel %vm171, %v1115, 0
    %1122 = vmatprep.subr.mxu0 0.0
    %1123 = vmatpush1.msra.mxu0 %v1117
    %1124 = vmatprep.subr.mxu0 0.0
    %1125 = vmatpush1.msra.mxu0 0.0
    %1126 = vmatprep.subr.mxu0 0.0
    %1127 = vmatpush1.msra.mxu0 0.0
    %1128 = vmatprep.subr.mxu0 0.0
    %1129 = vmatpush1.msra.mxu0 0.0
    %1130 = vmatprep.subr.mxu0 0.0
    %1131 = vmatpush1.msra.mxu0 0.0
    %1132 = vmatprep.subr.mxu0 0.0
    %1133 = vmatpush1.msra.mxu0 0.0
    %1134 = vmatprep.subr.mxu0 0.0
    %1135 = vmatpush1.msra.mxu0 0.0
    %1136 = vmatprep.subr.mxu0 0.0
    %1137 = vmatpush1.msra.mxu0 0.0
    %1138 = vmatprep.subr.mxu0 0.0
    %1139 = vmatpush1.msra.mxu0 0.0
    %1140 = vmatprep.subr.mxu0 0.0
    %1141 = vmatpush1.msra.mxu0 0.0
    %1142 = vmatprep.subr.mxu0 0.0
    %1143 = vmatpush1.msra.mxu0 0.0
    %1144 = vmatprep.subr.mxu0 0.0
    %1145 = vmatpush1.msra.mxu0 0.0
    %1146 = vmatprep.subr.mxu0 0.0
    %1147 = vmatpush1.msra.mxu0 0.0
    %1148 = vmatprep.subr.mxu0 0.0
    %1149 = vmatpush1.msra.mxu0 0.0
    %1150 = vmatprep.subr.mxu0 0.0
    %1151 = vmatpush1.msra.mxu0 0.0
    %1152 = vmatprep.subr.mxu0 0.0
    %1153 = vmatpush1.msra.mxu0 0.0
    %1154 = vmatprep.subr.mxu0 0.0
    %1155 = vmatpush1.msra.mxu0 0.0
    %1156 = vmatprep.subr.mxu0 0.0
    %1157 = vmatpush1.msra.mxu0 0.0
    %1158 = vmatprep.subr.mxu0 0.0
    %1159 = vmatpush1.msra.mxu0 0.0
    %1160 = vmatprep.subr.mxu0 0.0
    %1161 = vmatpush1.msra.mxu0 0.0
    %1162 = vmatprep.subr.mxu0 0.0
    %1163 = vmatpush1.msra.mxu0 0.0
    %1164 = vmatprep.subr.mxu0 0.0
    %1165 = vmatpush1.msra.mxu0 0.0
    %1166 = vmatprep.subr.mxu0 0.0
    %1167 = vmatpush1.msra.mxu0 0.0
    %1168 = vmatprep.subr.mxu0 0.0
    %1169 = vmatpush1.msra.mxu0 0.0
    %1170 = vmatprep.subr.mxu0 0.0
    %1171 = vmatpush1.msra.mxu0 0.0
    %1172 = vmatprep.subr.mxu0 0.0
    %1173 = vmatpush1.msra.mxu0 0.0
    %1174 = vmatprep.subr.mxu0 0.0
    %1175 = vmatpush1.msra.mxu0 0.0
    %1176 = vmatprep.subr.mxu0 0.0
    %1177 = vmatpush1.msra.mxu0 0.0
    %1178 = vmatprep.subr.mxu0 0.0
    %1179 = vmatpush1.msra.mxu0 0.0
    %1180 = vmatprep.subr.mxu0 0.0
    %1181 = vmatpush1.msra.mxu0 0.0
    %1182 = vmatprep.subr.mxu0 0.0
    %1183 = vmatpush1.msra.mxu0 0.0
    %1184 = vmatprep.subr.mxu0 0.0
    %1185 = vmatpush1.msra.mxu0 0.0
    %1186 = vmatprep.mubr.f32.mxu0 0.0
    %1187 = vmatmul.mubr.f32.gmra.mrb[0].mxu0 %v1120
    %v1188 = vpop.f32.mrb[0].mxu0
    %v1189 = vadd.f32 0.0, %v1188
    %v1190 = vpop.f32.mrb[0].mxu0
    %1191 = vdwg.mxu0
    %1192 = vrot.lane.b32.xlu0 %v165, 112
    %v1193 = vpop.permute.xlu0 %1192
    %1194 = vrot.lane.b32.xlu0 %v165, 80
    %v1195 = vpop.permute.xlu0 %1194
    %v1196 = vsel %vm171, %v1193, 0
    %v1198 = vsel %vm171, %v1195, 0
    %1200 = vmatprep.subr.mxu0 0.0
    %1201 = vmatpush1.xpose.msra.mxu0 %v1198
    %1202 = vmatprep.subr.mxu0 0.0
    %1203 = vmatpush1.xpose.msra.mxu0 0.0
    %1204 = vmatprep.subr.mxu0 0.0
    %1205 = vmatpush1.xpose.msra.mxu0 0.0
    %1206 = vmatprep.subr.mxu0 0.0
    %1207 = vmatpush1.xpose.msra.mxu0 0.0
    %1208 = vmatprep.subr.mxu0 0.0
    %1209 = vmatpush1.xpose.msra.mxu0 0.0
    %1210 = vmatprep.subr.mxu0 0.0
    %1211 = vmatpush1.xpose.msra.mxu0 0.0
    %1212 = vmatprep.subr.mxu0 0.0
    %1213 = vmatpush1.xpose.msra.mxu0 0.0
    %1214 = vmatprep.subr.mxu0 0.0
    %1215 = vmatpush1.xpose.msra.mxu0 0.0
    %1216 = vmatprep.subr.mxu0 0.0
    %1217 = vmatpush1.xpose.msra.mxu0 0.0
    %1218 = vmatprep.subr.mxu0 0.0
    %1219 = vmatpush1.xpose.msra.mxu0 0.0
    %1220 = vmatprep.subr.mxu0 0.0
    %1221 = vmatpush1.xpose.msra.mxu0 0.0
    %1222 = vmatprep.subr.mxu0 0.0
    %1223 = vmatpush1.xpose.msra.mxu0 0.0
    %1224 = vmatprep.subr.mxu0 0.0
    %1225 = vmatpush1.xpose.msra.mxu0 0.0
    %1226 = vmatprep.subr.mxu0 0.0
    %1227 = vmatpush1.xpose.msra.mxu0 0.0
    %1228 = vmatprep.subr.mxu0 0.0
    %1229 = vmatpush1.xpose.msra.mxu0 0.0
    %1230 = vmatprep.subr.mxu0 0.0
    %1231 = vmatpush1.xpose.msra.mxu0 0.0
    %1232 = vmatprep.subr.mxu0 0.0
    %1233 = vmatpush1.xpose.msra.mxu0 0.0
    %1234 = vmatprep.subr.mxu0 0.0
    %1235 = vmatpush1.xpose.msra.mxu0 0.0
    %1236 = vmatprep.subr.mxu0 0.0
    %1237 = vmatpush1.xpose.msra.mxu0 0.0
    %1238 = vmatprep.subr.mxu0 0.0
    %1239 = vmatpush1.xpose.msra.mxu0 0.0
    %1240 = vmatprep.subr.mxu0 0.0
    %1241 = vmatpush1.xpose.msra.mxu0 0.0
    %1242 = vmatprep.subr.mxu0 0.0
    %1243 = vmatpush1.xpose.msra.mxu0 0.0
    %1244 = vmatprep.subr.mxu0 0.0
    %1245 = vmatpush1.xpose.msra.mxu0 0.0
    %1246 = vmatprep.subr.mxu0 0.0
    %1247 = vmatpush1.xpose.msra.mxu0 0.0
    %1248 = vmatprep.subr.mxu0 0.0
    %1249 = vmatpush1.xpose.msra.mxu0 0.0
    %1250 = vmatprep.subr.mxu0 0.0
    %1251 = vmatpush1.xpose.msra.mxu0 0.0
    %1252 = vmatprep.subr.mxu0 0.0
    %1253 = vmatpush1.xpose.msra.mxu0 0.0
    %1254 = vmatprep.subr.mxu0 0.0
    %1255 = vmatpush1.xpose.msra.mxu0 0.0
    %1256 = vmatprep.subr.mxu0 0.0
    %1257 = vmatpush1.xpose.msra.mxu0 0.0
    %1258 = vmatprep.subr.mxu0 0.0
    %1259 = vmatpush1.xpose.msra.mxu0 0.0
    %1260 = vmatprep.subr.mxu0 0.0
    %1261 = vmatpush1.xpose.msra.mxu0 0.0
    %1262 = vmatprep.subr.mxu0 0.0
    %1263 = vmatpush1.xpose.msra.mxu0 0.0
    %1264 = vmatprep.mubr.f32.mxu0 0.0
    %1265 = vmatmul.mubr.f32.gmra.mrb[0].mxu0 %v1196
    %v1266 = vpop.f32.mrb[0].mxu0
    %v1267 = vadd.f32 0.0, %v1266
    %v1268 = vpop.f32.mrb[0].mxu0
    %1269 = vdwg.mxu0
    %v1270 = vsel %vm171, %v1267, -inf
    %1271 = vmax.xlane.f32.xlu0 %v1270
    %v1272 = vpop.xlane.xlu0 %1271
    %v1273 = vsub.f32 %v1267, %v1272
    %v1274 = vmul.f32 %v1273, 1.442695
    %v1275 = vpow.pop %v1274
    %v1276 = vsel %vm171, %v1275, 0.0
    %1277 = vadd.xlane.f32.xlu0 %v1276
    %v1278 = vpop.xlane.xlu0 %1277
    %v1279 = vrcp.pop %v1278
    %v1280 = vmul.f32 1.0, %v1279
    %v1281 = vmul.f32 %v1275, %v1280
    %1282 = vrot.lane.b32.xlu0 %v165, 48
    %v1283 = vpop.permute.xlu0 %1282
    %v1286 = vsel %vm171, %v1281, 0
    %1288 = vmatprep.subr.mxu0 0.0
    %1289 = vmatpush1.msra.mxu0 %v1283
    %1290 = vmatprep.subr.mxu0 0.0
    %1291 = vmatpush1.msra.mxu0 0.0
    %1292 = vmatprep.subr.mxu0 0.0
    %1293 = vmatpush1.msra.mxu0 0.0
    %1294 = vmatprep.subr.mxu0 0.0
    %1295 = vmatpush1.msra.mxu0 0.0
    %1296 = vmatprep.subr.mxu0 0.0
    %1297 = vmatpush1.msra.mxu0 0.0
    %1298 = vmatprep.subr.mxu0 0.0
    %1299 = vmatpush1.msra.mxu0 0.0
    %1300 = vmatprep.subr.mxu0 0.0
    %1301 = vmatpush1.msra.mxu0 0.0
    %1302 = vmatprep.subr.mxu0 0.0
    %1303 = vmatpush1.msra.mxu0 0.0
    %1304 = vmatprep.subr.mxu0 0.0
    %1305 = vmatpush1.msra.mxu0 0.0
    %1306 = vmatprep.subr.mxu0 0.0
    %1307 = vmatpush1.msra.mxu0 0.0
    %1308 = vmatprep.subr.mxu0 0.0
    %1309 = vmatpush1.msra.mxu0 0.0
    %1310 = vmatprep.subr.mxu0 0.0
    %1311 = vmatpush1.msra.mxu0 0.0
    %1312 = vmatprep.subr.mxu0 0.0
    %1313 = vmatpush1.msra.mxu0 0.0
    %1314 = vmatprep.subr.mxu0 0.0
    %1315 = vmatpush1.msra.mxu0 0.0
    %1316 = vmatprep.subr.mxu0 0.0
    %1317 = vmatpush1.msra.mxu0 0.0
    %1318 = vmatprep.subr.mxu0 0.0
    %1319 = vmatpush1.msra.mxu0 0.0
    %1320 = vmatprep.subr.mxu0 0.0
    %1321 = vmatpush1.msra.mxu0 0.0
    %1322 = vmatprep.subr.mxu0 0.0
    %1323 = vmatpush1.msra.mxu0 0.0
    %1324 = vmatprep.subr.mxu0 0.0
    %1325 = vmatpush1.msra.mxu0 0.0
    %1326 = vmatprep.subr.mxu0 0.0
    %1327 = vmatpush1.msra.mxu0 0.0
    %1328 = vmatprep.subr.mxu0 0.0
    %1329 = vmatpush1.msra.mxu0 0.0
    %1330 = vmatprep.subr.mxu0 0.0
    %1331 = vmatpush1.msra.mxu0 0.0
    %1332 = vmatprep.subr.mxu0 0.0
    %1333 = vmatpush1.msra.mxu0 0.0
    %1334 = vmatprep.subr.mxu0 0.0
    %1335 = vmatpush1.msra.mxu0 0.0
    %1336 = vmatprep.subr.mxu0 0.0
    %1337 = vmatpush1.msra.mxu0 0.0
    %1338 = vmatprep.subr.mxu0 0.0
    %1339 = vmatpush1.msra.mxu0 0.0
    %1340 = vmatprep.subr.mxu0 0.0
    %1341 = vmatpush1.msra.mxu0 0.0
    %1342 = vmatprep.subr.mxu0 0.0
    %1343 = vmatpush1.msra.mxu0 0.0
    %1344 = vmatprep.subr.mxu0 0.0
    %1345 = vmatpush1.msra.mxu0 0.0
    %1346 = vmatprep.subr.mxu0 0.0
    %1347 = vmatpush1.msra.mxu0 0.0
    %1348 = vmatprep.subr.mxu0 0.0
    %1349 = vmatpush1.msra.mxu0 0.0
    %1350 = vmatprep.subr.mxu0 0.0
    %1351 = vmatpush1.msra.mxu0 0.0
    %1352 = vmatprep.mubr.f32.mxu0 0.0
    %1353 = vmatmul.mubr.f32.gmra.mrb[0].mxu0 %v1286
    %v1354 = vpop.f32.mrb[0].mxu0
    %v1355 = vadd.f32 0.0, %v1354
    %v1356 = vpop.f32.mrb[0].mxu0
    %1357 = vdwg.mxu0
    %1358 = vrot.lane.b32.xlu0 %v165, 104
    %v1359 = vpop.permute.xlu0 %1358
    %1360 = vrot.lane.b32.xlu0 %v165, 72
    %v1361 = vpop.permute.xlu0 %1360
    %v1362 = vsel %vm171, %v1359, 0
    %v1364 = vsel %vm171, %v1361, 0
    %1366 = vmatprep.subr.mxu0 0.0
    %1367 = vmatpush1.xpose.msra.mxu0 %v1364
    %1368 = vmatprep.subr.mxu0 0.0
    %1369 = vmatpush1.xpose.msra.mxu0 0.0
    %1370 = vmatprep.subr.mxu0 0.0
    %1371 = vmatpush1.xpose.msra.mxu0 0.0
    %1372 = vmatprep.subr.mxu0 0.0
    %1373 = vmatpush1.xpose.msra.mxu0 0.0
    %1374 = vmatprep.subr.mxu0 0.0
    %1375 = vmatpush1.xpose.msra.mxu0 0.0
    %1376 = vmatprep.subr.mxu0 0.0
    %1377 = vmatpush1.xpose.msra.mxu0 0.0
    %1378 = vmatprep.subr.mxu0 0.0
    %1379 = vmatpush1.xpose.msra.mxu0 0.0
    %1380 = vmatprep.subr.mxu0 0.0
    %1381 = vmatpush1.xpose.msra.mxu0 0.0
    %1382 = vmatprep.subr.mxu0 0.0
    %1383 = vmatpush1.xpose.msra.mxu0 0.0
    %1384 = vmatprep.subr.mxu0 0.0
    %1385 = vmatpush1.xpose.msra.mxu0 0.0
    %1386 = vmatprep.subr.mxu0 0.0
    %1387 = vmatpush1.xpose.msra.mxu0 0.0
    %1388 = vmatprep.subr.mxu0 0.0
    %1389 = vmatpush1.xpose.msra.mxu0 0.0
    %1390 = vmatprep.subr.mxu0 0.0
    %1391 = vmatpush1.xpose.msra.mxu0 0.0
    %1392 = vmatprep.subr.mxu0 0.0
    %1393 = vmatpush1.xpose.msra.mxu0 0.0
    %1394 = vmatprep.subr.mxu0 0.0
    %1395 = vmatpush1.xpose.msra.mxu0 0.0
    %1396 = vmatprep.subr.mxu0 0.0
    %1397 = vmatpush1.xpose.msra.mxu0 0.0
    %1398 = vmatprep.subr.mxu0 0.0
    %1399 = vmatpush1.xpose.msra.mxu0 0.0
    %1400 = vmatprep.subr.mxu0 0.0
    %1401 = vmatpush1.xpose.msra.mxu0 0.0
    %1402 = vmatprep.subr.mxu0 0.0
    %1403 = vmatpush1.xpose.msra.mxu0 0.0
    %1404 = vmatprep.subr.mxu0 0.0
    %1405 = vmatpush1.xpose.msra.mxu0 0.0
    %1406 = vmatprep.subr.mxu0 0.0
    %1407 = vmatpush1.xpose.msra.mxu0 0.0
    %1408 = vmatprep.subr.mxu0 0.0
    %1409 = vmatpush1.xpose.msra.mxu0 0.0
    %1410 = vmatprep.subr.mxu0 0.0
    %1411 = vmatpush1.xpose.msra.mxu0 0.0
    %1412 = vmatprep.subr.mxu0 0.0
    %1413 = vmatpush1.xpose.msra.mxu0 0.0
    %1414 = vmatprep.subr.mxu0 0.0
    %1415 = vmatpush1.xpose.msra.mxu0 0.0
    %1416 = vmatprep.subr.mxu0 0.0
    %1417 = vmatpush1.xpose.msra.mxu0 0.0
    %1418 = vmatprep.subr.mxu0 0.0
    %1419 = vmatpush1.xpose.msra.mxu0 0.0
    %1420 = vmatprep.subr.mxu0 0.0
    %1421 = vmatpush1.xpose.msra.mxu0 0.0
    %1422 = vmatprep.subr.mxu0 0.0
    %1423 = vmatpush1.xpose.msra.mxu0 0.0
    %1424 = vmatprep.subr.mxu0 0.0
    %1425 = vmatpush1.xpose.msra.mxu0 0.0
    %1426 = vmatprep.subr.mxu0 0.0
    %1427 = vmatpush1.xpose.msra.mxu0 0.0
    %1428 = vmatprep.subr.mxu0 0.0
    %1429 = vmatpush1.xpose.msra.mxu0 0.0
    %1430 = vmatprep.mubr.f32.mxu0 0.0
    %1431 = vmatmul.mubr.f32.gmra.mrb[0].mxu0 %v1362
    %v1432 = vpop.f32.mrb[0].mxu0
    %v1433 = vadd.f32 0.0, %v1432
    %v1434 = vpop.f32.mrb[0].mxu0
    %1435 = vdwg.mxu0
    %v1436 = vsel %vm171, %v1433, -inf
    %1437 = vmax.xlane.f32.xlu0 %v1436
    %v1438 = vpop.xlane.xlu0 %1437
    %v1439 = vsub.f32 %v1433, %v1438
    %v1440 = vmul.f32 %v1439, 1.442695
    %v1441 = vpow.pop %v1440
    %v1442 = vsel %vm171, %v1441, 0.0
    %1443 = vadd.xlane.f32.xlu0 %v1442
    %v1444 = vpop.xlane.xlu0 %1443
    %v1445 = vrcp.pop %v1444
    %v1446 = vmul.f32 1.0, %v1445
    %v1447 = vmul.f32 %v1441, %v1446
    %1448 = vrot.lane.b32.xlu0 %v165, 40
    %v1449 = vpop.permute.xlu0 %1448
    %v1452 = vsel %vm171, %v1447, 0
    %1454 = vmatprep.subr.mxu0 0.0
    %1455 = vmatpush1.msra.mxu0 %v1449
    %1456 = vmatprep.subr.mxu0 0.0
    %1457 = vmatpush1.msra.mxu0 0.0
    %1458 = vmatprep.subr.mxu0 0.0
    %1459 = vmatpush1.msra.mxu0 0.0
    %1460 = vmatprep.subr.mxu0 0.0
    %1461 = vmatpush1.msra.mxu0 0.0
    %1462 = vmatprep.subr.mxu0 0.0
    %1463 = vmatpush1.msra.mxu0 0.0
    %1464 = vmatprep.subr.mxu0 0.0
    %1465 = vmatpush1.msra.mxu0 0.0
    %1466 = vmatprep.subr.mxu0 0.0
    %1467 = vmatpush1.msra.mxu0 0.0
    %1468 = vmatprep.subr.mxu0 0.0
    %1469 = vmatpush1.msra.mxu0 0.0
    %1470 = vmatprep.subr.mxu0 0.0
    %1471 = vmatpush1.msra.mxu0 0.0
    %1472 = vmatprep.subr.mxu0 0.0
    %1473 = vmatpush1.msra.mxu0 0.0
    %1474 = vmatprep.subr.mxu0 0.0
    %1475 = vmatpush1.msra.mxu0 0.0
    %1476 = vmatprep.subr.mxu0 0.0
    %1477 = vmatpush1.msra.mxu0 0.0
    %1478 = vmatprep.subr.mxu0 0.0
    %1479 = vmatpush1.msra.mxu0 0.0
    %1480 = vmatprep.subr.mxu0 0.0
    %1481 = vmatpush1.msra.mxu0 0.0
    %1482 = vmatprep.subr.mxu0 0.0
    %1483 = vmatpush1.msra.mxu0 0.0
    %1484 = vmatprep.subr.mxu0 0.0
    %1485 = vmatpush1.msra.mxu0 0.0
    %1486 = vmatprep.subr.mxu0 0.0
    %1487 = vmatpush1.msra.mxu0 0.0
    %1488 = vmatprep.subr.mxu0 0.0
    %1489 = vmatpush1.msra.mxu0 0.0
    %1490 = vmatprep.subr.mxu0 0.0
    %1491 = vmatpush1.msra.mxu0 0.0
    %1492 = vmatprep.subr.mxu0 0.0
    %1493 = vmatpush1.msra.mxu0 0.0
    %1494 = vmatprep.subr.mxu0 0.0
    %1495 = vmatpush1.msra.mxu0 0.0
    %1496 = vmatprep.subr.mxu0 0.0
    %1497 = vmatpush1.msra.mxu0 0.0
    %1498 = vmatprep.subr.mxu0 0.0
    %1499 = vmatpush1.msra.mxu0 0.0
    %1500 = vmatprep.subr.mxu0 0.0
    %1501 = vmatpush1.msra.mxu0 0.0
    %1502 = vmatprep.subr.mxu0 0.0
    %1503 = vmatpush1.msra.mxu0 0.0
    %1504 = vmatprep.subr.mxu0 0.0
    %1505 = vmatpush1.msra.mxu0 0.0
    %1506 = vmatprep.subr.mxu0 0.0
    %1507 = vmatpush1.msra.mxu0 0.0
    %1508 = vmatprep.subr.mxu0 0.0
    %1509 = vmatpush1.msra.mxu0 0.0
    %1510 = vmatprep.subr.mxu0 0.0
    %1511 = vmatpush1.msra.mxu0 0.0
    %1512 = vmatprep.subr.mxu0 0.0
    %1513 = vmatpush1.msra.mxu0 0.0
    %1514 = vmatprep.subr.mxu0 0.0
    %1515 = vmatpush1.msra.mxu0 0.0
    %1516 = vmatprep.subr.mxu0 0.0
    %1517 = vmatpush1.msra.mxu0 0.0
    %1518 = vmatprep.mubr.f32.mxu0 0.0
    %1519 = vmatmul.mubr.f32.gmra.mrb[0].mxu0 %v1452
    %v1520 = vpop.f32.mrb[0].mxu0
    %v1521 = vadd.f32 0.0, %v1520
    %v1522 = vpop.f32.mrb[0].mxu0
    %1523 = vdwg.mxu0
    %1525 = vrot.lane.b32.xlu0 %v1189, 8
    %v1526 = vpop.permute.xlu0 %1525
    %1529 = vrot.lane.b32.xlu0 %v1355, 16
    %v1530 = vpop.permute.xlu0 %1529
    %1533 = vrot.lane.b32.xlu0 %v1521, 24
    %v1534 = vpop.permute.xlu0 %1533
    %v1536 = vsel %vm171, %v1023, %v1526
    %v1537 = vsel %vm845, %v1536, %v1530
    %v1538 = vsel %vm847, %v1537, %v1534
    %1539 = vrot.lane.b32.xlu0 %v1115, 8
    %v1540 = vpop.permute.xlu0 %1539
    %1542 = vrot.lane.b32.xlu0 %v1281, 16
    %v1543 = vpop.permute.xlu0 %1542
    %1545 = vrot.lane.b32.xlu0 %v1447, 24
    %v1546 = vpop.permute.xlu0 %1545
    %v1548 = vsel %vm171, %v949, %v1540
    %v1549 = vsel %vm845, %v1548, %v1543
    %v1550 = vsel %vm847, %v1549, %v1546
    %v1551 = vld [vmem:[#allocation7] sm:$0xff]
    %v1552 = vld [vmem:[#allocation7 + $0x8] sm:$0xff]
    %v1553 = vld [vmem:[#allocation7 + $0x10] sm:$0xff]
    %v1554 = vld [vmem:[#allocation7 + $0x18] sm:$0xff]
    %v1555 = vld [vmem:[%s4] sm:$0x1]
    %v1557 = vlaneseq
    %v1558 = vshrl.u32 %v1557, 7
    %v1559 = vsub.s32 0, %v1558
    %v1560 = vrot.slane %v1555, %v1559
    %vm1562 = vcmask 261120
    %v1564 = vsel %vm1562, %v848, 0
    %v1567 = vsel %vm1562, %v1538, 0
    %1569 = vmatprep.subr.mxu0 0.0
    %1570 = vmatpush1.msra.mxu0 %v1551
    %1571 = vmatprep.subr.mxu0 0.0
    %1572 = vmatpush1.msra.mxu0 %v1552
    %1573 = vmatprep.subr.mxu0 0.0
    %1574 = vmatpush1.msra.mxu0 %v1553
    %1575 = vmatprep.subr.mxu0 0.0
    %1576 = vmatpush1.msra.mxu0 %v1554
    %1577 = vmatprep.subr.mxu0 0.0
    %1578 = vmatpush1.msra.mxu0 0.0
    %1579 = vmatprep.subr.mxu0 0.0
    %1580 = vmatpush1.msra.mxu0 0.0
    %1581 = vmatprep.subr.mxu0 0.0
    %1582 = vmatpush1.msra.mxu0 0.0
    %1583 = vmatprep.subr.mxu0 0.0
    %1584 = vmatpush1.msra.mxu0 0.0
    %1585 = vmatprep.subr.mxu0 0.0
    %1586 = vmatpush1.msra.mxu0 0.0
    %1587 = vmatprep.subr.mxu0 0.0
    %1588 = vmatpush1.msra.mxu0 0.0
    %1589 = vmatprep.subr.mxu0 0.0
    %1590 = vmatpush1.msra.mxu0 0.0
    %1591 = vmatprep.subr.mxu0 0.0
    %1592 = vmatpush1.msra.mxu0 0.0
    %1593 = vmatprep.subr.mxu0 0.0
    %1594 = vmatpush1.msra.mxu0 0.0
    %1595 = vmatprep.subr.mxu0 0.0
    %1596 = vmatpush1.msra.mxu0 0.0
    %1597 = vmatprep.subr.mxu0 0.0
    %1598 = vmatpush1.msra.mxu0 0.0
    %1599 = vmatprep.subr.mxu0 0.0
    %1600 = vmatpush1.msra.mxu0 0.0
    %1601 = vmatprep.subr.mxu0 0.0
    %1602 = vmatpush1.msra.mxu0 0.0
    %1603 = vmatprep.subr.mxu0 0.0
    %1604 = vmatpush1.msra.mxu0 0.0
    %1605 = vmatprep.subr.mxu0 0.0
    %1606 = vmatpush1.msra.mxu0 0.0
    %1607 = vmatprep.subr.mxu0 0.0
    %1608 = vmatpush1.msra.mxu0 0.0
    %1609 = vmatprep.subr.mxu0 0.0
    %1610 = vmatpush1.msra.mxu0 0.0
    %1611 = vmatprep.subr.mxu0 0.0
    %1612 = vmatpush1.msra.mxu0 0.0
    %1613 = vmatprep.subr.mxu0 0.0
    %1614 = vmatpush1.msra.mxu0 0.0
    %1615 = vmatprep.subr.mxu0 0.0
    %1616 = vmatpush1.msra.mxu0 0.0
    %1617 = vmatprep.subr.mxu0 0.0
    %1618 = vmatpush1.msra.mxu0 0.0
    %1619 = vmatprep.subr.mxu0 0.0
    %1620 = vmatpush1.msra.mxu0 0.0
    %1621 = vmatprep.subr.mxu0 0.0
    %1622 = vmatpush1.msra.mxu0 0.0
    %1623 = vmatprep.subr.mxu0 0.0
    %1624 = vmatpush1.msra.mxu0 0.0
    %1625 = vmatprep.subr.mxu0 0.0
    %1626 = vmatpush1.msra.mxu0 0.0
    %1627 = vmatprep.subr.mxu0 0.0
    %1628 = vmatpush1.msra.mxu0 0.0
    %1629 = vmatprep.subr.mxu0 0.0
    %1630 = vmatpush1.msra.mxu0 0.0
    %1631 = vmatprep.subr.mxu0 0.0
    %1632 = vmatpush1.msra.mxu0 0.0
    %1633 = vmatprep.mubr.f32.mxu0 0.0
    %1634 = vmatmul.mubr.f32.gmra.mrb[0].mxu0 %v1564
    %v1635 = vpop.f32.mrb[0].mxu0
    %v1636 = vadd.f32 %v1560, %v1635
    %v1637 = vpop.f32.mrb[0].mxu0
    %1638 = vmatprep.mubr.f32.mxu0 0.0
    %1639 = vmatmul.mubr.f32.gmra.mrb[0].mxu0 %v1567
    %v1640 = vpop.f32.mrb[0].mxu0
    %v1641 = vadd.f32 %v1560, %v1640
    %v1642 = vpop.f32.mrb[0].mxu0
    %1643 = vdwg.mxu0
    %v1644 = vxor.u32 %v1636, 2147483648
    %v1645 = vxor.u32 %v1641, 2147483648
    %v1646 = vmul.f32 %v1644, 1.442695
    %v1647 = vpow.pop %v1646
    %v1648 = vmul.f32 %v1645, 1.442695
    %v1649 = vpow.pop %v1648
    %v1650 = vadd.f32 %v1647, 1.0
    %v1651 = vadd.f32 %v1649, 1.0
    %v1652 = vrcp.pop %v1650
    %v1653 = vmul.f32 1.0, %v1652
    %v1654 = vrcp.pop %v1651
    %v1655 = vmul.f32 1.0, %v1654
    %v1656 = vmul.f32 %v1653, %v848
    %v1657 = vmul.f32 %v1655, %v1538
    %1658 = vst.msk [vmem:[#allocation8] sm:$0xff] %vm1562, %v1656
    %1659 = vst.msk [vmem:[#allocation8 + $0x8] sm:$0xff] %vm1562, %v1657
    %1660 = vst.msk [vmem:[#allocation9] sm:$0xff] %vm1562, %v860
    %1661 = vst.msk [vmem:[#allocation9 + $0x8] sm:$0xff] %vm1562, %v1550
    // Predicated region
    $region34: #{tpu_custom_call.1} parent=1 // pred_check
      _
    $region35: #{tpu_custom_call.1} parent=1 // pred_check_branch
      %1663 = sbr.rel (0) target = $region37
    $region36: #{tpu_custom_call.1} parent=1 // pred_region
      %s1665 = ssub.s32 256, 256
      %1666 = vsyncadd [#allocation4], %s1665
      %s1667 = sshll.u32 [#allocation8], 4
      %s1668 = int_to_ptr.vmem [resolvable:$true] %s1667
      %1673 = dma.vmem_to_hbm [thread:$0]  %s1668, 256, %s5, [#allocation4], 128, 128, 8
    $region37: #{tpu_custom_call.1} parent=1 // pred_fallthru
      _
    // Predicated region
    $region38: #{tpu_custom_call.1} parent=1 // pred_check
      _
    $region39: #{tpu_custom_call.1} parent=1 // pred_check_branch
      %1675 = sbr.rel (0) target = $region41
    $region40: #{tpu_custom_call.1} parent=1 // pred_region
      %s1677 = ssub.s32 256, 256
      %1678 = vsyncadd [#allocation10], %s1677
      %s1679 = sshll.u32 [#allocation9], 4
      %s1680 = int_to_ptr.vmem [resolvable:$true] %s1679
      %1685 = dma.vmem_to_hbm [thread:$0]  %s1680, 256, %s6, [#allocation10], 128, 128, 8
    $region41: #{tpu_custom_call.1} parent=1 // pred_fallthru
      _
    // Predicated region
    $region42: #{tpu_custom_call.1} parent=1 // pred_check
      _
    $region43: #{tpu_custom_call.1} parent=1 // pred_check_branch
      %1687 = sbr.rel (0) target = $region45
    $region44: #{tpu_custom_call.1} parent=1 // pred_region
      %1688 = dma.done [#allocation4], 256
    $region45: #{tpu_custom_call.1} parent=1 // pred_fallthru
      _
    // Predicated region
    $region46: #{tpu_custom_call.1} parent=1 // pred_check
      _
    $region47: #{tpu_custom_call.1} parent=1 // pred_check_branch
      %1690 = sbr.rel (0) target = $region49
    $region48: #{tpu_custom_call.1} parent=1 // pred_region
      %1691 = dma.done [#allocation10], 256
    $region49: #{tpu_custom_call.1} parent=1 // pred_fallthru
      _
    %1692 = vsyncpa [#allocation3], 1
    %1693 = vsyncpa [#allocation6], 1
    %1694 = vsyncpa [#allocation4], 1
    %1695 = vsyncpa [#allocation10], 1

</llo_original>
